<compile_context>
chip_gen: v5e
topology: v5e:2x2
jax: 0.10.0
libtpu: 0.0.40
codegen_flags: <defaults>
</compile_context>

<pallas_src>
import jax
import jax.numpy as jnp
from jax import lax
from jax.experimental import pallas as pl
from jax.experimental.pallas import tpu as pltpu


CHAR_BLOCK = 16   # independent char-sequence rows (of TW*B) per grid step
WORD_BLOCK = 16   # batch rows per grid step


# ----------------------------- helpers --------------------------------------

def _round_up(x, m):
    return (x + m - 1) // m * m


def _vmem_limit(block_bytes):
    """Generation-aware scoped-VMEM limit (~7/8 of physical capacity)."""
    cap = 64 << 20
    try:
        cap = int(getattr(pltpu.get_tpu_info(), "vmem_capacity_bytes", cap))
    except Exception:
        pass
    ceiling = cap // 8 * 7            # ~56 MiB on v7x, ~112 MiB on v5e/v6e
    return int(min(max(int(block_bytes) + (4 << 20), 16 << 20), ceiling))


def prep_lstm_weights(w_ih_f, w_hh_f, b_ih_f, b_hh_f,
                      w_ih_b, w_hh_b, b_ih_b, b_hh_b):
    """Reorder torch-layout LSTM weights for the fused kernels.

    Gate columns regrouped from torch's [i, f, g, o] to [i, f, o, g] so the
    three sigmoid gates are contiguous (one wide sigmoid per direction/step).

    Returns:
      wih   : (Din, 8H) bf16, columns = [fwd i,f,o,g | bwd i,f,o,g]
      whh_f : (H, 4H)  bf16  forward recurrent weights (same column order)
      whh_b : (H, 4H)  bf16
      b     : (1, 8H)  f32   (b_ih + b_hh per direction, same column order)
    """
    H = w_hh_f.shape[1]

    def reorder(w):  # (rows, 4H) in [i, f, g, o] order -> [i, f, o, g]
        return jnp.concatenate(
            [w[:, 0:H], w[:, H:2 * H], w[:, 3 * H:4 * H], w[:, 2 * H:3 * H]],
            axis=1)

    wih = jnp.concatenate(
        [reorder(w_ih_f.T.astype(jnp.float32)),
         reorder(w_ih_b.T.astype(jnp.float32))], axis=1)
    whh_f = reorder(w_hh_f.T.astype(jnp.float32))
    whh_b = reorder(w_hh_b.T.astype(jnp.float32))
    b = jnp.concatenate(
        [reorder((b_ih_f + b_hh_f).astype(jnp.float32)[None, :]),
         reorder((b_ih_b + b_hh_b).astype(jnp.float32)[None, :])], axis=1)
    return (wih.astype(jnp.bfloat16), whh_f.astype(jnp.bfloat16),
            whh_b.astype(jnp.bfloat16), b)


def _bidir_cell(gx_ref, m_ref, whhf_ref, whhb_ref, H, BB, s, T,
                h_f, c_f, h_b, c_b):
    """One fused bidirectional LSTM step (fwd at time s, bwd at time T-1-s)."""
    G3, G4 = 3 * H, 4 * H
    t_f = s
    t_b = T - 1 - s
    off_f = pl.multiple_of(t_f * BB, BB)
    off_b = pl.multiple_of(t_b * BB, BB)
    # Two half-size recurrent matmuls (bf16 MXU): no lane-concat of h_f/h_b
    # and no multiply-by-zero block of a combined block-diagonal Whh.
    rec_f = jnp.dot(h_f.astype(jnp.bfloat16), whhf_ref[...],
                    preferred_element_type=jnp.float32)
    rec_b = jnp.dot(h_b.astype(jnp.bfloat16), whhb_ref[...],
                    preferred_element_type=jnp.float32)
    gf = gx_ref[pl.ds(off_f, BB), 0:G4] + rec_f
    gb = gx_ref[pl.ds(off_b, BB), G4:2 * G4] + rec_b
    # Grouped activations: one sigmoid over [i,f,o], one tanh over g.
    sf = jax.nn.sigmoid(gf[:, 0:G3])
    gf_t = jnp.tanh(gf[:, G3:G4])
    sb = jax.nn.sigmoid(gb[:, 0:G3])
    gb_t = jnp.tanh(gb[:, G3:G4])
    cf_n = sf[:, H:2 * H] * c_f + sf[:, 0:H] * gf_t
    hf_n = sf[:, 2 * H:3 * H] * jnp.tanh(cf_n)
    cb_n = sb[:, H:2 * H] * c_b + sb[:, 0:H] * gb_t
    hb_n = sb[:, 2 * H:3 * H] * jnp.tanh(cb_n)
    m_f = m_ref[t_f] != 0          # (BB, 1) bool
    m_b = m_ref[t_b] != 0
    return hf_n, cf_n, hb_n, cb_n, m_f, m_b, off_f, off_b


# ------------------- fused bidirectional char-LSTM kernel -------------------

def make_char_bilstm_kernel(TC, NB, hc):
    """Only the final hidden states are emitted (hs stream is never used)."""

    def kernel(x_ref, m_ref, wih_ref, whhf_ref, whhb_ref, b_ref,
               hfin_ref, gx_ref):
        # Hoisted input->hidden projection for BOTH directions and ALL
        # timesteps: one bf16 MXU call with M = TC*NB.
        x = x_ref[...].reshape(TC * NB, hc)
        gx_ref[...] = (jnp.dot(x, wih_ref[...],
                               preferred_element_type=jnp.float32)
                       + b_ref[...])

        def step(s, carry):
            h_f, c_f, h_b, c_b = carry
            hf_n, cf_n, hb_n, cb_n, m_f, m_b, _, _ = _bidir_cell(
                gx_ref, m_ref, whhf_ref, whhb_ref, hc, NB, s, TC,
                h_f, c_f, h_b, c_b)
            # packed-sequence semantics: state frozen on padded timesteps.
            h_f = jnp.where(m_f, hf_n, h_f)
            c_f = jnp.where(m_f, cf_n, c_f)
            h_b = jnp.where(m_b, hb_n, h_b)
            c_b = jnp.where(m_b, cb_n, c_b)
            return h_f, c_f, h_b, c_b

        z = jnp.zeros((NB, hc), jnp.float32)
        h_f, _, h_b, _ = lax.fori_loop(0, TC, step, (z, z, z, z))
        hfin_ref[...] = jnp.concatenate([h_f, h_b], axis=-1)

    return kernel


def run_char_bilstm(x_tm, valid_tm, wih, whh_f, whh_b, b):
    """x_tm: (TC, N_pad, hc) bf16; valid_tm: (TC, N_pad, 1) int32.
    Returns final hidden states (N_pad, 2*hc) f32."""
    TC, Np, hc = x_tm.shape
    NB = CHAR_BLOCK
    grid = (Np // NB,)
    block_bytes = (2 * 2 * TC * NB * hc                         # x block x2 buf
                   + 2 * 4 * TC * NB                            # mask block
                   + 2 * (wih.size + whh_f.size + whh_b.size)   # bf16 weights
                   + 4 * b.size
                   + 2 * 4 * NB * 2 * hc                        # out block
                   + 4 * TC * NB * 8 * hc)                      # gx scratch
    return pl.pallas_call(
        make_char_bilstm_kernel(TC, NB, hc),
        out_shape=jax.ShapeDtypeStruct((Np, 2 * hc), jnp.float32),
        grid=grid,
        in_specs=[
            pl.BlockSpec((TC, NB, hc), lambda i: (0, i, 0),
                         pipeline_mode=pl.Buffered(2)),
            pl.BlockSpec((TC, NB, 1), lambda i: (0, i, 0)),
            pl.BlockSpec(wih.shape, lambda i: (0, 0)),
            pl.BlockSpec(whh_f.shape, lambda i: (0, 0)),
            pl.BlockSpec(whh_b.shape, lambda i: (0, 0)),
            pl.BlockSpec(b.shape, lambda i: (0, 0)),
        ],
        out_specs=pl.BlockSpec((NB, 2 * hc), lambda i: (i, 0)),
        scratch_shapes=[pltpu.VMEM((TC * NB, 8 * hc), jnp.float32)],
        compiler_params=pltpu.CompilerParams(
            dimension_semantics=("parallel",),
            vmem_limit_bytes=_vmem_limit(block_bytes)),
    )(x_tm, valid_tm, wih, whh_f, whh_b, b)


# ----------- fused word BiLSTM + h2t linear + CRF forward kernel ------------

def make_word_fused_kernel(TW, BB, Din, H, Kp, start_idx):

    def kernel(x_ref, m_ref, sel_ref, wih_ref, whhf_ref, whhb_ref, b_ref,
               h2t_w_ref, h2t_b_ref, ett_ref, stop_row_ref,
               logits_ref, fscore_ref, gx_ref, hs_ref):
        # -- 1) hoisted input projection (bf16 MXU, M = TW*BB) ----------------
        x = x_ref[...].reshape(TW * BB, Din)
        gx_ref[...] = (jnp.dot(x, wih_ref[...],
                               preferred_element_type=jnp.float32)
                       + b_ref[...])

        # -- 2) bidirectional recurrence --------------------------------------
        def lstm_step(s, carry):
            h_f, c_f, h_b, c_b = carry
            hf_n, cf_n, hb_n, cb_n, m_f, m_b, off_f, off_b = _bidir_cell(
                gx_ref, m_ref, whhf_ref, whhb_ref, H, BB, s, TW,
                h_f, c_f, h_b, c_b)
            # pad_packed semantics: padded timesteps emit zeros; one combined
            # hs scratch, written in halves (no post-loop concatenate).
            hs_ref[pl.ds(off_f, BB), 0:H] = jnp.where(m_f, hf_n, 0.0)
            hs_ref[pl.ds(off_b, BB), H:2 * H] = jnp.where(m_b, hb_n, 0.0)
            h_f = jnp.where(m_f, hf_n, h_f)
            c_f = jnp.where(m_f, cf_n, c_f)
            h_b = jnp.where(m_b, hb_n, h_b)
            c_b = jnp.where(m_b, cb_n, c_b)
            return h_f, c_f, h_b, c_b

        z = jnp.zeros((BB, H), jnp.float32)
        lax.fori_loop(0, TW, lstm_step, (z, z, z, z))

        # -- 3) h2t projection: one bf16 MXU call, lane-dense Kp=128 output ---
        logits = (jnp.dot(hs_ref[...].astype(jnp.bfloat16), h2t_w_ref[...],
                          preferred_element_type=jnp.float32)
                  + h2t_b_ref[...])
        logits_ref[...] = logits.reshape(TW, BB, Kp)

        # -- 4) CRF forward (partition) score, exp-space MXU recursion --------
        #    alpha_t = m + log(exp(alpha - m) @ exp(trans).T) + logit_t
        ett = ett_ref[...]                                       # (Kp, Kp)
        col = lax.broadcasted_iota(jnp.int32, (BB, Kp), 1)
        alpha0 = jnp.where(col == start_idx, 0.0, -10000.0).astype(jnp.float32)
        final0 = jnp.zeros((BB, Kp), jnp.float32)

        def crf_step(t, carry):
            alpha, final = carry
            logit_t = logits_ref[t]                              # (BB, Kp)
            sel_t = sel_ref[t] != 0                              # (BB, 1)
            m = jnp.max(alpha, axis=-1, keepdims=True)
            s_ = jnp.dot(jnp.exp(alpha - m), ett,
                         preferred_element_type=jnp.float32)
            alpha_t = m + jnp.log(s_) + logit_t
            # NOTE: like the reference, alpha keeps evolving past t = len-1;
            # the per-sample result is captured at t == len-1 via sel_t.
            final = jnp.where(sel_t, alpha_t, final)
            return alpha_t, final

        _, final = lax.fori_loop(0, TW, crf_step, (alpha0, final0))
        end = final + stop_row_ref[...]
        mx = jnp.max(end, axis=-1, keepdims=True)
        fscore_ref[...] = mx + jnp.log(jnp.sum(jnp.exp(end - mx),
                                               axis=-1, keepdims=True))

    return kernel


def run_word_bilstm_crf(x_tm, valid_tm, sel_tm, wih, whh_f, whh_b, b,
                        h2t_w, h2t_b, ett, stop_row, start_idx):
    """x_tm: (TW, B_pad, Din) bf16; valid/sel: (TW, B_pad, 1) int32.
    Returns (logits (TW, B_pad, Kp) f32, f_score (B_pad, 1) f32)."""
    TW, Bp, Din = x_tm.shape
    H = whh_f.shape[0]
    Kp = ett.shape[0]
    BB = WORD_BLOCK
    grid = (Bp // BB,)
    block_bytes = (2 * 2 * TW * BB * Din
                   + 2 * 4 * 2 * TW * BB
                   + 2 * (wih.size + whh_f.size + whh_b.size + h2t_w.size)
                   + 4 * (b.size + h2t_b.size + ett.size + stop_row.size)
                   + 2 * 4 * (TW * BB * Kp + BB)
                   + 4 * (TW * BB * 8 * H + TW * BB * 2 * H))
    return pl.pallas_call(
        make_word_fused_kernel(TW, BB, Din, H, Kp, start_idx),
        out_shape=(jax.ShapeDtypeStruct((TW, Bp, Kp), jnp.float32),
                   jax.ShapeDtypeStruct((Bp, 1), jnp.float32)),
        grid=grid,
        in_specs=[
            pl.BlockSpec((TW, BB, Din), lambda i: (0, i, 0),
                         pipeline_mode=pl.Buffered(2)),
            pl.BlockSpec((TW, BB, 1), lambda i: (0, i, 0)),
            pl.BlockSpec((TW, BB, 1), lambda i: (0, i, 0)),
            pl.BlockSpec(wih.shape, lambda i: (0, 0)),
            pl.BlockSpec(whh_f.shape, lambda i: (0, 0)),
            pl.BlockSpec(whh_b.shape, lambda i: (0, 0)),
            pl.BlockSpec(b.shape, lambda i: (0, 0)),
            pl.BlockSpec(h2t_w.shape, lambda i: (0, 0)),
            pl.BlockSpec(h2t_b.shape, lambda i: (0, 0)),
            pl.BlockSpec(ett.shape, lambda i: (0, 0)),
            pl.BlockSpec(stop_row.shape, lambda i: (0, 0)),
        ],
        out_specs=(pl.BlockSpec((TW, BB, Kp), lambda i: (0, i, 0)),
                   pl.BlockSpec((BB, 1), lambda i: (i, 0))),
        scratch_shapes=[pltpu.VMEM((TW * BB, 8 * H), jnp.float32),
                        pltpu.VMEM((TW * BB, 2 * H), jnp.float32)],
        compiler_params=pltpu.CompilerParams(
            dimension_semantics=("parallel",),
            vmem_limit_bytes=_vmem_limit(block_bytes)),
    )(x_tm, valid_tm, sel_tm, wih, whh_f, whh_b, b,
      h2t_w, h2t_b, ett, stop_row)


# ----------------------------- full forward ---------------------------------

def bilstm_crf_forward(params, words, chars, tags, word_mask, word_lens,
                       char_lens, start_idx, stop_idx):
    B, TW = words.shape
    TC = chars.shape[2]
    hc = params["char_emb"].shape[1]
    K = params["transitions"].shape[0]
    Kp = _round_up(K, 128)

    N = TW * B
    N_pad = _round_up(N, CHAR_BLOCK)
    B_pad = _round_up(B, WORD_BLOCK)

    # ---- char BiLSTM final hidden states (both directions, one kernel) -----
    # TODO(synk): embedding-table lookups (gathers) stay in plain JAX.
    chars_tm = chars.reshape(N, TC).T                            # (TC, N) int
    chars_tm = jnp.pad(chars_tm, ((0, 0), (0, N_pad - N)))
    xc_tm = jnp.take(params["char_emb"], chars_tm,
                     axis=0).astype(jnp.bfloat16)                # (TC,Npad,hc)
    clens = char_lens.reshape(N)
    cvalid = (jnp.arange(TC)[:, None] < clens[None, :]).astype(jnp.int32)
    cvalid = jnp.pad(cvalid, ((0, 0), (0, N_pad - N)))[:, :, None]

    cw = prep_lstm_weights(
        params["char_wih_f"], params["char_whh_f"],
        params["char_bih_f"], params["char_bhh_f"],
        params["char_wih_b"], params["char_whh_b"],
        params["char_bih_b"], params["char_bhh_b"])
    h_char = run_char_bilstm(xc_tm, cvalid, *cw)[:N]             # (N, 2hc)
    embedded_chars_tm = h_char.reshape(TW, B, 2 * hc)            # time-major

    # ---- word BiLSTM input (time-major) -------------------------------------
    embedded_words_tm = jnp.take(params["word_emb"], words.T, axis=0)
    embedded_tm = jnp.concatenate([embedded_chars_tm, embedded_words_tm],
                                  axis=-1)                       # (TW, B, Din)
    embedded_tm = jnp.pad(
        embedded_tm, ((0, 0), (0, B_pad - B), (0, 0))).astype(jnp.bfloat16)

    wvalid = jnp.pad(jnp.logical_not(word_mask).T.astype(jnp.int32),
                     ((0, 0), (0, B_pad - B)))[:, :, None]       # (TW,Bpad,1)
    sel = jnp.pad((jnp.arange(TW)[:, None] == (word_lens - 1)[None, :]
                   ).astype(jnp.int32),
                  ((0, 0), (0, B_pad - B)))[:, :, None]

    ww = prep_lstm_weights(
        params["word_wih_f"], params["word_whh_f"],
        params["word_bih_f"], params["word_bhh_f"],
        params["word_wih_b"], params["word_whh_b"],
        params["word_bih_b"], params["word_bhh_b"])

    trans = params["transitions"].astype(jnp.float32)
    trans_pad = jnp.pad(trans, ((0, Kp - K), (0, Kp - K)),
                        constant_values=-10000.0)
    ett = jnp.exp(trans_pad).T                                   # (Kp, Kp)
    stop_row = trans_pad[stop_idx][None, :]                      # (1, Kp)
    h2t_w = jnp.pad(jnp.transpose(params["h2t_w"]).astype(jnp.float32),
                    ((0, 0), (0, Kp - K))).astype(jnp.bfloat16)  # (2H, Kp)
    h2t_b = jnp.pad(params["h2t_b"].astype(jnp.float32),
                    (0, Kp - K))[None, :]                        # (1, Kp)

    logits_pad, f_pad = run_word_bilstm_crf(
        embedded_tm, wvalid, sel, *ww, h2t_w, h2t_b, ett, stop_row, start_idx)
    logits_bm = jnp.transpose(logits_pad[:, :B, :K], (1, 0, 2))  # (B, TW, K)
    f_score = f_pad[:B, 0]

    # ---- gold score: vectorized gathers (no Python time loop) --------------
    start_col = jnp.full((B, 1), start_idx, dtype=tags.dtype)
    tags_cat = jnp.concatenate([start_col, tags], axis=1)        # (B, TW+1)
    mask_cat = jnp.concatenate([jnp.zeros((B, 1), dtype=bool), word_mask],
                               axis=1)                           # (B, TW+1)
    cur = tags_cat[:, 1:]                                        # (B, TW)
    prev = tags_cat[:, :-1]                                      # (B, TW)
    emit = jnp.take_along_axis(logits_bm, cur[:, :, None], axis=2)[:, :, 0]
    step = trans[cur, prev] + emit                               # (B, TW)
    # reproduces the reference's shifted-mask behaviour (mask_cat[:, i])
    step = jnp.where(mask_cat[:, :TW], 0.0, step)
    g_score = jnp.sum(step, axis=1)
    last_tag = tags_cat[jnp.arange(B), word_lens]
    g_score = g_score + trans[stop_idx, last_tag]

    return jnp.mean(-(g_score - f_score))


# ----------------------------- parameter init -------------------------------

def init_params(key, vocab_word, vocab_char, hidden, tag_size):
    hc = hidden // 4
    din_word = 2 * hc + hidden

    def u(k, shape):
        return jax.random.uniform(k, shape, jnp.float32, -0.1, 0.1)

    ks = jax.random.split(key, 21)
    return {
        "word_emb": u(ks[0], (vocab_word, hidden)),
        "char_emb": u(ks[1], (vocab_char, hc)),
        # char BiLSTM (forward / backward directions), torch layout (4H, Din)
        "char_wih_f": u(ks[2], (4 * hc, hc)),
        "char_whh_f": u(ks[3], (4 * hc, hc)),
        "char_bih_f": u(ks[4], (4 * hc,)),
        "char_bhh_f": u(ks[5], (4 * hc,)),
        "char_wih_b": u(ks[6], (4 * hc, hc)),
        "char_whh_b": u(ks[7], (4 * hc, hc)),
        "char_bih_b": u(ks[8], (4 * hc,)),
        "char_bhh_b": u(ks[9], (4 * hc,)),
        # word BiLSTM
        "word_wih_f": u(ks[10], (4 * hidden, din_word)),
        "word_whh_f": u(ks[11], (4 * hidden, hidden)),
        "word_bih_f": u(ks[12], (4 * hidden,)),
        "word_bhh_f": u(ks[13], (4 * hidden,)),
        "word_wih_b": u(ks[14], (4 * hidden, din_word)),
        "word_whh_b": u(ks[15], (4 * hidden, hidden)),
        "word_bih_b": u(ks[16], (4 * hidden,)),
        "word_bhh_b": u(ks[17], (4 * hidden,)),
        # h2t + CRF transitions
        "h2t_w": u(ks[18], (tag_size, 2 * hidden)),
        "h2t_b": u(ks[19], (tag_size,)),
        "transitions": jax.random.normal(ks[20], (tag_size, tag_size),
                                         jnp.float32),
    }


# ----------------------------- main ------------------------------------------

if __name__ == "__main__":
    B, TW, TC = 4, 8, 6          # batch, word seq len, char seq len
    hidden = 32
    vocab_word, vocab_char = 50, 30
    num_real_tags = 5
    K = num_real_tags + 2        # + START, STOP
    START_IDX, STOP_IDX = K - 2, K - 1

    key = jax.random.PRNGKey(0)
    kp, kd = jax.random.split(key)
    params = init_params(kp, vocab_word, vocab_char, hidden, K)

    kw, kc, kt, kcl = jax.random.split(kd, 4)
    words = jax.random.randint(kw, (B, TW), 0, vocab_word, dtype=jnp.int32)
    chars = jax.random.randint(kc, (TW, B, TC), 0, vocab_char, dtype=jnp.int32)
    tags = jax.random.randint(kt, (B, TW), 0, num_real_tags, dtype=jnp.int32)
    char_lens = jax.random.randint(kcl, (TW, B), 1, TC + 1, dtype=jnp.int32)
    word_lens = jnp.array([TW, TW - 2, TW - 3, 3], dtype=jnp.int32)
    word_mask = jnp.arange(TW)[None, :] >= word_lens[:, None]   # True = pad

    fwd = jax.jit(bilstm_crf_forward,
                  static_argnames=("start_idx", "stop_idx"))
    loss = fwd(params, words, chars, tags, word_mask, word_lens, char_lens,
               start_idx=START_IDX, stop_idx=STOP_IDX)
    jax.block_until_ready(loss)
    print("KERNEL_OK")
</pallas_src>

<mosaic_0001>
module attributes {stable_mosaic.version = 11 : i64} {
  func.func @kernel(%arg0: i32, %arg1: memref<6x16x8xbf16, #tpu.memory_space<vmem>>, %arg2: memref<6x16x1xi32, #tpu.memory_space<vmem>>, %arg3: memref<8x64xbf16, #tpu.memory_space<vmem>>, %arg4: memref<8x32xbf16, #tpu.memory_space<vmem>>, %arg5: memref<8x32xbf16, #tpu.memory_space<vmem>>, %arg6: memref<1x64xf32, #tpu.memory_space<vmem>>, %arg7: memref<16x16xf32, #tpu.memory_space<vmem>>, %arg8: memref<96x64xf32, #tpu.memory_space<vmem>>) attributes {dimension_semantics = [#tpu.dimension_semantics<parallel>], iteration_bounds = array<i64: 2>, scalar_prefetch = 0 : i64, scratch_operands = 1 : i64, tpu.core_type = #tpu.core_type<tc>, window_params = [{pipeline_mode = #tpu.pipeline_mode<double_buffered>, transform_indices = @transform_0, window_bounds = array<i64: 6, 16, 8>}, {transform_indices = @transform_1, window_bounds = array<i64: 6, 16, 1>}, {pipeline_mode = #tpu.pipeline_mode<synchronous>, transform_indices = @transform_2, window_bounds = array<i64: 8, 64>}, {pipeline_mode = #tpu.pipeline_mode<synchronous>, transform_indices = @transform_3, window_bounds = array<i64: 8, 32>}, {pipeline_mode = #tpu.pipeline_mode<synchronous>, transform_indices = @transform_4, window_bounds = array<i64: 8, 32>}, {pipeline_mode = #tpu.pipeline_mode<synchronous>, transform_indices = @transform_5, window_bounds = array<i64: 1, 64>}, {transform_indices = @transform_6, window_bounds = array<i64: 16, 16>}]} {
    %c0 = arith.constant 0 : index
    %c0_0 = arith.constant 0 : index
    %c0_1 = arith.constant 0 : index
    %0 = vector.load %arg1[%c0, %c0_0, %c0_1] : memref<6x16x8xbf16, #tpu.memory_space<vmem>>, vector<6x16x8xbf16>
    %1 = vector.shape_cast %0 : vector<6x16x8xbf16> to vector<96x8xbf16>
    %c0_2 = arith.constant 0 : index
    %c0_3 = arith.constant 0 : index
    %2 = vector.load %arg3[%c0_2, %c0_3] : memref<8x64xbf16, #tpu.memory_space<vmem>>, vector<8x64xbf16>
    %cst = arith.constant dense<0.000000e+00> : vector<96x64xf32>
    %3 = tpu.matmul %1, %2, %cst {dimension_numbers = #tpu.dot_dimension_numbers<[1], [0], [0], [1], [0, 0, 1, 1], [], []>} : vector<96x8xbf16>, vector<8x64xbf16>, vector<96x64xf32> -> vector<96x64xf32>
    %c0_4 = arith.constant 0 : index
    %c0_5 = arith.constant 0 : index
    %4 = vector.load %arg6[%c0_4, %c0_5] : memref<1x64xf32, #tpu.memory_space<vmem>>, vector<1x64xf32>
    %5 = vector.broadcast %4 : vector<1x64xf32> to vector<96x64xf32>
    %6 = arith.addf %3, %5 : vector<96x64xf32>
    %c0_6 = arith.constant 0 : index
    %c0_7 = arith.constant 0 : index
    %7 = vector.load %arg8[%c0_6, %c0_7] : memref<96x64xf32, #tpu.memory_space<vmem>>, vector<96x64xf32>
    tpu.vector_store %arg8[%c0_6, %c0_7], %6 {strides = array<i32>} : memref<96x64xf32, #tpu.memory_space<vmem>>, vector<96x64xf32>,
    %cst_8 = arith.constant 0.000000e+00 : f32
    %8 = vector.broadcast %cst_8 : f32 to vector<16x8xf32>
    %c0_i32 = arith.constant 0 : i32
    %c6_i32 = arith.constant 6 : i32
    %9 = arith.addi %c0_i32, %c6_i32 : i32
    %c1_i32 = arith.constant 1 : i32
    %10:4 = scf.for %arg9 = %c0_i32 to %9 step %c1_i32 iter_args(%arg10 = %8, %arg11 = %8, %arg12 = %8, %arg13 = %8) -> (vector<16x8xf32>, vector<16x8xf32>, vector<16x8xf32>, vector<16x8xf32>)  : i32 {
      %c5_i32 = arith.constant 5 : i32
      %13 = arith.subi %c5_i32, %arg9 : i32
      %c16_i32 = arith.constant 16 : i32
      %14 = arith.muli %arg9, %c16_i32 : i32
      %15 = tpu.assume_multiple %14, 16 : i32
      %c16_i32_12 = arith.constant 16 : i32
      %16 = arith.muli %13, %c16_i32_12 : i32
      %17 = tpu.assume_multiple %16, 16 : i32
      %18 = arith.truncf %arg10 : vector<16x8xf32> to vector<16x8xbf16>
      %c0_13 = arith.constant 0 : index
      %c0_14 = arith.constant 0 : index
      %19 = vector.load %arg4[%c0_13, %c0_14] : memref<8x32xbf16, #tpu.memory_space<vmem>>, vector<8x32xbf16>
      %cst_15 = arith.constant dense<0.000000e+00> : vector<16x32xf32>
      %20 = tpu.matmul %18, %19, %cst_15 {dimension_numbers = #tpu.dot_dimension_numbers<[1], [0], [0], [1], [0, 0, 1, 1], [], []>} : vector<16x8xbf16>, vector<8x32xbf16>, vector<16x32xf32> -> vector<16x32xf32>
      %21 = arith.truncf %arg12 : vector<16x8xf32> to vector<16x8xbf16>
      %c0_16 = arith.constant 0 : index
      %c0_17 = arith.constant 0 : index
      %22 = vector.load %arg5[%c0_16, %c0_17] : memref<8x32xbf16, #tpu.memory_space<vmem>>, vector<8x32xbf16>
      %cst_18 = arith.constant dense<0.000000e+00> : vector<16x32xf32>
      %23 = tpu.matmul %21, %22, %cst_18 {dimension_numbers = #tpu.dot_dimension_numbers<[1], [0], [0], [1], [0, 0, 1, 1], [], []>} : vector<16x8xbf16>, vector<8x32xbf16>, vector<16x32xf32> -> vector<16x32xf32>
      %24 = arith.index_cast %15 : i32 to index
      %c0_19 = arith.constant 0 : index
      %25 = vector.load %arg8[%24, %c0_19] : memref<96x64xf32, #tpu.memory_space<vmem>>, vector<16x32xf32>
      %26 = arith.addf %25, %20 : vector<16x32xf32>
      %27 = arith.index_cast %17 : i32 to index
      %c32 = arith.constant 32 : index
      %28 = vector.load %arg8[%27, %c32] : memref<96x64xf32, #tpu.memory_space<vmem>>, vector<16x32xf32>
      %29 = arith.addf %28, %23 : vector<16x32xf32>
      %30 = vector.extract_strided_slice %26 {offsets = [0, 0], sizes = [16, 24], strides = [1, 1]} : vector<16x32xf32> to vector<16x24xf32>
      %31 = arith.negf %30 : vector<16x24xf32>
      %32 = math.exp %31 : vector<16x24xf32>
      %cst_20 = arith.constant 1.000000e+00 : f32
      %33 = vector.broadcast %cst_20 : f32 to vector<16x24xf32>
      %34 = arith.addf %33, %32 : vector<16x24xf32>
      %35 = arith.divf %33, %34 : vector<16x24xf32>
      %36 = vector.extract_strided_slice %26 {offsets = [0, 24], sizes = [16, 8], strides = [1, 1]} : vector<16x32xf32> to vector<16x8xf32>
      %37 = math.tanh %36 : vector<16x8xf32>
      %38 = vector.extract_strided_slice %29 {offsets = [0, 0], sizes = [16, 24], strides = [1, 1]} : vector<16x32xf32> to vector<16x24xf32>
      %39 = arith.negf %38 : vector<16x24xf32>
      %40 = math.exp %39 : vector<16x24xf32>
      %cst_21 = arith.constant 1.000000e+00 : f32
      %41 = vector.broadcast %cst_21 : f32 to vector<16x24xf32>
      %42 = arith.addf %41, %40 : vector<16x24xf32>
      %43 = arith.divf %41, %42 : vector<16x24xf32>
      %44 = vector.extract_strided_slice %29 {offsets = [0, 24], sizes = [16, 8], strides = [1, 1]} : vector<16x32xf32> to vector<16x8xf32>
      %45 = math.tanh %44 : vector<16x8xf32>
      %46 = vector.extract_strided_slice %35 {offsets = [0, 8], sizes = [16, 8], strides = [1, 1]} : vector<16x24xf32> to vector<16x8xf32>
      %47 = arith.mulf %46, %arg11 : vector<16x8xf32>
      %48 = vector.extract_strided_slice %35 {offsets = [0, 0], sizes = [16, 8], strides = [1, 1]} : vector<16x24xf32> to vector<16x8xf32>
      %49 = arith.mulf %48, %37 : vector<16x8xf32>
      %50 = arith.addf %47, %49 : vector<16x8xf32>
      %51 = vector.extract_strided_slice %35 {offsets = [0, 16], sizes = [16, 8], strides = [1, 1]} : vector<16x24xf32> to vector<16x8xf32>
      %52 = math.tanh %50 : vector<16x8xf32>
      %53 = arith.mulf %51, %52 : vector<16x8xf32>
      %54 = vector.extract_strided_slice %43 {offsets = [0, 8], sizes = [16, 8], strides = [1, 1]} : vector<16x24xf32> to vector<16x8xf32>
      %55 = arith.mulf %54, %arg13 : vector<16x8xf32>
      %56 = vector.extract_strided_slice %43 {offsets = [0, 0], sizes = [16, 8], strides = [1, 1]} : vector<16x24xf32> to vector<16x8xf32>
      %57 = arith.mulf %56, %45 : vector<16x8xf32>
      %58 = arith.addf %55, %57 : vector<16x8xf32>
      %59 = vector.extract_strided_slice %43 {offsets = [0, 16], sizes = [16, 8], strides = [1, 1]} : vector<16x24xf32> to vector<16x8xf32>
      %60 = math.tanh %58 : vector<16x8xf32>
      %61 = arith.mulf %59, %60 : vector<16x8xf32>
      %62 = arith.index_cast %arg9 : i32 to index
      %c0_22 = arith.constant 0 : index
      %c0_23 = arith.constant 0 : index
      %63 = vector.load %arg2[%62, %c0_22, %c0_23] : memref<6x16x1xi32, #tpu.memory_space<vmem>>, vector<1x16x1xi32>
      %64 = vector.shape_cast %63 : vector<1x16x1xi32> to vector<16x1xi32>
      %c0_i32_24 = arith.constant 0 : i32
      %65 = vector.broadcast %c0_i32_24 : i32 to vector<16x1xi32>
      %66 = arith.cmpi ne, %64, %65 : vector<16x1xi32>
      %67 = arith.index_cast %13 : i32 to index
      %c0_25 = arith.constant 0 : index
      %c0_26 = arith.constant 0 : index
      %68 = vector.load %arg2[%67, %c0_25, %c0_26] : memref<6x16x1xi32, #tpu.memory_space<vmem>>, vector<1x16x1xi32>
      %69 = vector.shape_cast %68 : vector<1x16x1xi32> to vector<16x1xi32>
      %c0_i32_27 = arith.constant 0 : i32
      %70 = vector.broadcast %c0_i32_27 : i32 to vector<16x1xi32>
      %71 = arith.cmpi ne, %69, %70 : vector<16x1xi32>
      %72 = vector.shape_cast %66 : vector<16x1xi1> to vector<16x1xi1>
      %73 = vector.broadcast %72 : vector<16x1xi1> to vector<16x8xi1>
      %74 = arith.select %73, %53, %arg10 : vector<16x8xi1>, vector<16x8xf32>
      %75 = vector.shape_cast %66 : vector<16x1xi1> to vector<16x1xi1>
      %76 = vector.broadcast %75 : vector<16x1xi1> to vector<16x8xi1>
      %77 = arith.select %76, %50, %arg11 : vector<16x8xi1>, vector<16x8xf32>
      %78 = vector.shape_cast %71 : vector<16x1xi1> to vector<16x1xi1>
      %79 = vector.broadcast %78 : vector<16x1xi1> to vector<16x8xi1>
      %80 = arith.select %79, %61, %arg12 : vector<16x8xi1>, vector<16x8xf32>
      %81 = vector.shape_cast %71 : vector<16x1xi1> to vector<16x1xi1>
      %82 = vector.broadcast %81 : vector<16x1xi1> to vector<16x8xi1>
      %83 = arith.select %82, %58, %arg13 : vector<16x8xi1>, vector<16x8xf32>
      scf.yield %74, %77, %80, %83 : vector<16x8xf32>, vector<16x8xf32>, vector<16x8xf32>, vector<16x8xf32>
    }
    %c6_i32_9 = arith.constant 6 : i32
    %11 = tpu.concatenate %10#0, %10#2 in 1 : vector<16x8xf32>, vector<16x8xf32> -> vector<16x16xf32>
    %c0_10 = arith.constant 0 : index
    %c0_11 = arith.constant 0 : index
    %12 = vector.load %arg7[%c0_10, %c0_11] : memref<16x16xf32, #tpu.memory_space<vmem>>, vector<16x16xf32>
    tpu.vector_store %arg7[%c0_10, %c0_11], %11 {strides = array<i32>} : memref<16x16xf32, #tpu.memory_space<vmem>>, vector<16x16xf32>,
    return
  }
  func.func @transform_0(%arg0: i32) -> (i32, i32, i32) {
    %c0_i32 = arith.constant 0 : i32
    %c0_i32_0 = arith.constant 0 : i32
    %c0_i32_1 = arith.constant 0 : i32
    return %c0_i32, %arg0, %c0_i32_0 : i32, i32, i32
  }
  func.func @transform_1(%arg0: i32) -> (i32, i32, i32) {
    %c0_i32 = arith.constant 0 : i32
    %c0_i32_0 = arith.constant 0 : i32
    %c0_i32_1 = arith.constant 0 : i32
    return %c0_i32, %arg0, %c0_i32_0 : i32, i32, i32
  }
  func.func @transform_2(%arg0: i32) -> (i32, i32) {
    %c0_i32 = arith.constant 0 : i32
    %c0_i32_0 = arith.constant 0 : i32
    %c0_i32_1 = arith.constant 0 : i32
    return %c0_i32, %c0_i32_0 : i32, i32
  }
  func.func @transform_3(%arg0: i32) -> (i32, i32) {
    %c0_i32 = arith.constant 0 : i32
    %c0_i32_0 = arith.constant 0 : i32
    %c0_i32_1 = arith.constant 0 : i32
    return %c0_i32, %c0_i32_0 : i32, i32
  }
  func.func @transform_4(%arg0: i32) -> (i32, i32) {
    %c0_i32 = arith.constant 0 : i32
    %c0_i32_0 = arith.constant 0 : i32
    %c0_i32_1 = arith.constant 0 : i32
    return %c0_i32, %c0_i32_0 : i32, i32
  }
  func.func @transform_5(%arg0: i32) -> (i32, i32) {
    %c0_i32 = arith.constant 0 : i32
    %c0_i32_0 = arith.constant 0 : i32
    %c0_i32_1 = arith.constant 0 : i32
    return %c0_i32, %c0_i32_0 : i32, i32
  }
  func.func @transform_6(%arg0: i32) -> (i32, i32) {
    %c0_i32 = arith.constant 0 : i32
    %c0_i32_0 = arith.constant 0 : i32
    return %arg0, %c0_i32 : i32, i32
  }
}

module attributes {stable_mosaic.version = 11 : i64} {
  func.func @kernel(%arg0: i32, %arg1: memref<8x16x48xbf16, #tpu.memory_space<vmem>>, %arg2: memref<8x16x1xi32, #tpu.memory_space<vmem>>, %arg3: memref<8x16x1xi32, #tpu.memory_space<vmem>>, %arg4: memref<48x256xbf16, #tpu.memory_space<vmem>>, %arg5: memref<32x128xbf16, #tpu.memory_space<vmem>>, %arg6: memref<32x128xbf16, #tpu.memory_space<vmem>>, %arg7: memref<1x256xf32, #tpu.memory_space<vmem>>, %arg8: memref<64x128xbf16, #tpu.memory_space<vmem>>, %arg9: memref<1x128xf32, #tpu.memory_space<vmem>>, %arg10: memref<128x128xf32, #tpu.memory_space<vmem>>, %arg11: memref<1x128xf32, #tpu.memory_space<vmem>>, %arg12: memref<8x16x128xf32, #tpu.memory_space<vmem>>, %arg13: memref<16x1xf32, #tpu.memory_space<vmem>>, %arg14: memref<128x256xf32, #tpu.memory_space<vmem>>, %arg15: memref<128x64xf32, #tpu.memory_space<vmem>>) attributes {dimension_semantics = [#tpu.dimension_semantics<parallel>], iteration_bounds = array<i64: 1>, scalar_prefetch = 0 : i64, scratch_operands = 2 : i64, tpu.core_type = #tpu.core_type<tc>, window_params = [{pipeline_mode = #tpu.pipeline_mode<double_buffered>, transform_indices = @transform_0, window_bounds = array<i64: 8, 16, 48>}, {transform_indices = @transform_1, window_bounds = array<i64: 8, 16, 1>}, {transform_indices = @transform_2, window_bounds = array<i64: 8, 16, 1>}, {pipeline_mode = #tpu.pipeline_mode<synchronous>, transform_indices = @transform_3, window_bounds = array<i64: 48, 256>}, {pipeline_mode = #tpu.pipeline_mode<synchronous>, transform_indices = @transform_4, window_bounds = array<i64: 32, 128>}, {pipeline_mode = #tpu.pipeline_mode<synchronous>, transform_indices = @transform_5, window_bounds = array<i64: 32, 128>}, {pipeline_mode = #tpu.pipeline_mode<synchronous>, transform_indices = @transform_6, window_bounds = array<i64: 1, 256>}, {pipeline_mode = #tpu.pipeline_mode<synchronous>, transform_indices = @transform_7, window_bounds = array<i64: 64, 128>}, {pipeline_mode = #tpu.pipeline_mode<synchronous>, transform_indices = @transform_8, window_bounds = array<i64: 1, 128>}, {pipeline_mode = #tpu.pipeline_mode<synchronous>, transform_indices = @transform_9, window_bounds = array<i64: 128, 128>}, {pipeline_mode = #tpu.pipeline_mode<synchronous>, transform_indices = @transform_10, window_bounds = array<i64: 1, 128>}, {transform_indices = @transform_11, window_bounds = array<i64: 8, 16, 128>}, {transform_indices = @transform_12, window_bounds = array<i64: 16, 1>}]} {
    %c0 = arith.constant 0 : index
    %c0_0 = arith.constant 0 : index
    %c0_1 = arith.constant 0 : index
    %0 = vector.load %arg1[%c0, %c0_0, %c0_1] : memref<8x16x48xbf16, #tpu.memory_space<vmem>>, vector<8x16x48xbf16>
    %1 = vector.shape_cast %0 : vector<8x16x48xbf16> to vector<128x48xbf16>
    %c0_2 = arith.constant 0 : index
    %c0_3 = arith.constant 0 : index
    %2 = vector.load %arg4[%c0_2, %c0_3] : memref<48x256xbf16, #tpu.memory_space<vmem>>, vector<48x256xbf16>
    %cst = arith.constant dense<0.000000e+00> : vector<128x256xf32>
    %3 = tpu.matmul %1, %2, %cst {dimension_numbers = #tpu.dot_dimension_numbers<[1], [0], [0], [1], [0, 0, 1, 1], [], []>} : vector<128x48xbf16>, vector<48x256xbf16>, vector<128x256xf32> -> vector<128x256xf32>
    %c0_4 = arith.constant 0 : index
    %c0_5 = arith.constant 0 : index
    %4 = vector.load %arg7[%c0_4, %c0_5] : memref<1x256xf32, #tpu.memory_space<vmem>>, vector<1x256xf32>
    %5 = vector.broadcast %4 : vector<1x256xf32> to vector<128x256xf32>
    %6 = arith.addf %3, %5 : vector<128x256xf32>
    %c0_6 = arith.constant 0 : index
    %c0_7 = arith.constant 0 : index
    %7 = vector.load %arg14[%c0_6, %c0_7] : memref<128x256xf32, #tpu.memory_space<vmem>>, vector<128x256xf32>
    tpu.vector_store %arg14[%c0_6, %c0_7], %6 {strides = array<i32>} : memref<128x256xf32, #tpu.memory_space<vmem>>, vector<128x256xf32>,
    %cst_8 = arith.constant 0.000000e+00 : f32
    %8 = vector.broadcast %cst_8 : f32 to vector<16x32xf32>
    %c0_i32 = arith.constant 0 : i32
    %c8_i32 = arith.constant 8 : i32
    %9 = arith.addi %c0_i32, %c8_i32 : i32
    %c1_i32 = arith.constant 1 : i32
    %10:4 = scf.for %arg16 = %c0_i32 to %9 step %c1_i32 iter_args(%arg17 = %8, %arg18 = %8, %arg19 = %8, %arg20 = %8) -> (vector<16x32xf32>, vector<16x32xf32>, vector<16x32xf32>, vector<16x32xf32>)  : i32 {
      %c7_i32 = arith.constant 7 : i32
      %43 = arith.subi %c7_i32, %arg16 : i32
      %c16_i32 = arith.constant 16 : i32
      %44 = arith.muli %arg16, %c16_i32 : i32
      %45 = tpu.assume_multiple %44, 16 : i32
      %c16_i32_35 = arith.constant 16 : i32
      %46 = arith.muli %43, %c16_i32_35 : i32
      %47 = tpu.assume_multiple %46, 16 : i32
      %48 = arith.truncf %arg17 : vector<16x32xf32> to vector<16x32xbf16>
      %c0_36 = arith.constant 0 : index
      %c0_37 = arith.constant 0 : index
      %49 = vector.load %arg5[%c0_36, %c0_37] : memref<32x128xbf16, #tpu.memory_space<vmem>>, vector<32x128xbf16>
      %cst_38 = arith.constant dense<0.000000e+00> : vector<16x128xf32>
      %50 = tpu.matmul %48, %49, %cst_38 {dimension_numbers = #tpu.dot_dimension_numbers<[1], [0], [0], [1], [0, 0, 1, 1], [], []>} : vector<16x32xbf16>, vector<32x128xbf16>, vector<16x128xf32> -> vector<16x128xf32>
      %51 = arith.truncf %arg19 : vector<16x32xf32> to vector<16x32xbf16>
      %c0_39 = arith.constant 0 : index
      %c0_40 = arith.constant 0 : index
      %52 = vector.load %arg6[%c0_39, %c0_40] : memref<32x128xbf16, #tpu.memory_space<vmem>>, vector<32x128xbf16>
      %cst_41 = arith.constant dense<0.000000e+00> : vector<16x128xf32>
      %53 = tpu.matmul %51, %52, %cst_41 {dimension_numbers = #tpu.dot_dimension_numbers<[1], [0], [0], [1], [0, 0, 1, 1], [], []>} : vector<16x32xbf16>, vector<32x128xbf16>, vector<16x128xf32> -> vector<16x128xf32>
      %54 = arith.index_cast %45 : i32 to index
      %c0_42 = arith.constant 0 : index
      %55 = vector.load %arg14[%54, %c0_42] : memref<128x256xf32, #tpu.memory_space<vmem>>, vector<16x128xf32>
      %56 = arith.addf %55, %50 : vector<16x128xf32>
      %57 = arith.index_cast %47 : i32 to index
      %c128 = arith.constant 128 : index
      %58 = vector.load %arg14[%57, %c128] : memref<128x256xf32, #tpu.memory_space<vmem>>, vector<16x128xf32>
      %59 = arith.addf %58, %53 : vector<16x128xf32>
      %60 = vector.extract_strided_slice %56 {offsets = [0, 0], sizes = [16, 96], strides = [1, 1]} : vector<16x128xf32> to vector<16x96xf32>
      %61 = arith.negf %60 : vector<16x96xf32>
      %62 = math.exp %61 : vector<16x96xf32>
      %cst_43 = arith.constant 1.000000e+00 : f32
      %63 = vector.broadcast %cst_43 : f32 to vector<16x96xf32>
      %64 = arith.addf %63, %62 : vector<16x96xf32>
      %65 = arith.divf %63, %64 : vector<16x96xf32>
      %66 = vector.extract_strided_slice %56 {offsets = [0, 96], sizes = [16, 32], strides = [1, 1]} : vector<16x128xf32> to vector<16x32xf32>
      %67 = math.tanh %66 : vector<16x32xf32>
      %68 = vector.extract_strided_slice %59 {offsets = [0, 0], sizes = [16, 96], strides = [1, 1]} : vector<16x128xf32> to vector<16x96xf32>
      %69 = arith.negf %68 : vector<16x96xf32>
      %70 = math.exp %69 : vector<16x96xf32>
      %cst_44 = arith.constant 1.000000e+00 : f32
      %71 = vector.broadcast %cst_44 : f32 to vector<16x96xf32>
      %72 = arith.addf %71, %70 : vector<16x96xf32>
      %73 = arith.divf %71, %72 : vector<16x96xf32>
      %74 = vector.extract_strided_slice %59 {offsets = [0, 96], sizes = [16, 32], strides = [1, 1]} : vector<16x128xf32> to vector<16x32xf32>
      %75 = math.tanh %74 : vector<16x32xf32>
      %76 = vector.extract_strided_slice %65 {offsets = [0, 32], sizes = [16, 32], strides = [1, 1]} : vector<16x96xf32> to vector<16x32xf32>
      %77 = arith.mulf %76, %arg18 : vector<16x32xf32>
      %78 = vector.extract_strided_slice %65 {offsets = [0, 0], sizes = [16, 32], strides = [1, 1]} : vector<16x96xf32> to vector<16x32xf32>
      %79 = arith.mulf %78, %67 : vector<16x32xf32>
      %80 = arith.addf %77, %79 : vector<16x32xf32>
      %81 = vector.extract_strided_slice %65 {offsets = [0, 64], sizes = [16, 32], strides = [1, 1]} : vector<16x96xf32> to vector<16x32xf32>
      %82 = math.tanh %80 : vector<16x32xf32>
      %83 = arith.mulf %81, %82 : vector<16x32xf32>
      %84 = vector.extract_strided_slice %73 {offsets = [0, 32], sizes = [16, 32], strides = [1, 1]} : vector<16x96xf32> to vector<16x32xf32>
      %85 = arith.mulf %84, %arg20 : vector<16x32xf32>
      %86 = vector.extract_strided_slice %73 {offsets = [0, 0], sizes = [16, 32], strides = [1, 1]} : vector<16x96xf32> to vector<16x32xf32>
      %87 = arith.mulf %86, %75 : vector<16x32xf32>
      %88 = arith.addf %85, %87 : vector<16x32xf32>
      %89 = vector.extract_strided_slice %73 {offsets = [0, 64], sizes = [16, 32], strides = [1, 1]} : vector<16x96xf32> to vector<16x32xf32>
      %90 = math.tanh %88 : vector<16x32xf32>
      %91 = arith.mulf %89, %90 : vector<16x32xf32>
      %92 = arith.index_cast %arg16 : i32 to index
      %c0_45 = arith.constant 0 : index
      %c0_46 = arith.constant 0 : index
      %93 = vector.load %arg2[%92, %c0_45, %c0_46] : memref<8x16x1xi32, #tpu.memory_space<vmem>>, vector<1x16x1xi32>
      %94 = vector.shape_cast %93 : vector<1x16x1xi32> to vector<16x1xi32>
      %c0_i32_47 = arith.constant 0 : i32
      %95 = vector.broadcast %c0_i32_47 : i32 to vector<16x1xi32>
      %96 = arith.cmpi ne, %94, %95 : vector<16x1xi32>
      %97 = arith.index_cast %43 : i32 to index
      %c0_48 = arith.constant 0 : index
      %c0_49 = arith.constant 0 : index
      %98 = vector.load %arg2[%97, %c0_48, %c0_49] : memref<8x16x1xi32, #tpu.memory_space<vmem>>, vector<1x16x1xi32>
      %99 = vector.shape_cast %98 : vector<1x16x1xi32> to vector<16x1xi32>
      %c0_i32_50 = arith.constant 0 : i32
      %100 = vector.broadcast %c0_i32_50 : i32 to vector<16x1xi32>
      %101 = arith.cmpi ne, %99, %100 : vector<16x1xi32>
      %cst_51 = arith.constant 0.000000e+00 : f32
      %102 = vector.shape_cast %96 : vector<16x1xi1> to vector<16x1xi1>
      %103 = vector.broadcast %102 : vector<16x1xi1> to vector<16x32xi1>
      %104 = vector.broadcast %cst_51 : f32 to vector<16x32xf32>
      %105 = arith.select %103, %83, %104 : vector<16x32xi1>, vector<16x32xf32>
      %106 = arith.index_cast %45 : i32 to index
      %c0_52 = arith.constant 0 : index
      %107 = vector.load %arg15[%106, %c0_52] : memref<128x64xf32, #tpu.memory_space<vmem>>, vector<16x32xf32>
      tpu.vector_store %arg15[%106, %c0_52], %105 {strides = array<i32>} : memref<128x64xf32, #tpu.memory_space<vmem>>, vector<16x32xf32>,
      %cst_53 = arith.constant 0.000000e+00 : f32
      %108 = vector.shape_cast %101 : vector<16x1xi1> to vector<16x1xi1>
      %109 = vector.broadcast %108 : vector<16x1xi1> to vector<16x32xi1>
      %110 = vector.broadcast %cst_53 : f32 to vector<16x32xf32>
      %111 = arith.select %109, %91, %110 : vector<16x32xi1>, vector<16x32xf32>
      %112 = arith.index_cast %47 : i32 to index
      %c32 = arith.constant 32 : index
      %113 = vector.load %arg15[%112, %c32] : memref<128x64xf32, #tpu.memory_space<vmem>>, vector<16x32xf32>
      tpu.vector_store %arg15[%112, %c32], %111 {strides = array<i32>} : memref<128x64xf32, #tpu.memory_space<vmem>>, vector<16x32xf32>,
      %114 = vector.shape_cast %96 : vector<16x1xi1> to vector<16x1xi1>
      %115 = vector.broadcast %114 : vector<16x1xi1> to vector<16x32xi1>
      %116 = arith.select %115, %83, %arg17 : vector<16x32xi1>, vector<16x32xf32>
      %117 = vector.shape_cast %96 : vector<16x1xi1> to vector<16x1xi1>
      %118 = vector.broadcast %117 : vector<16x1xi1> to vector<16x32xi1>
      %119 = arith.select %118, %80, %arg18 : vector<16x32xi1>, vector<16x32xf32>
      %120 = vector.shape_cast %101 : vector<16x1xi1> to vector<16x1xi1>
      %121 = vector.broadcast %120 : vector<16x1xi1> to vector<16x32xi1>
      %122 = arith.select %121, %91, %arg19 : vector<16x32xi1>, vector<16x32xf32>
      %123 = vector.shape_cast %101 : vector<16x1xi1> to vector<16x1xi1>
      %124 = vector.broadcast %123 : vector<16x1xi1> to vector<16x32xi1>
      %125 = arith.select %124, %88, %arg20 : vector<16x32xi1>, vector<16x32xf32>
      scf.yield %116, %119, %122, %125 : vector<16x32xf32>, vector<16x32xf32>, vector<16x32xf32>, vector<16x32xf32>
    }
    %c8_i32_9 = arith.constant 8 : i32
    %c0_10 = arith.constant 0 : index
    %c0_11 = arith.constant 0 : index
    %11 = vector.load %arg15[%c0_10, %c0_11] : memref<128x64xf32, #tpu.memory_space<vmem>>, vector<128x64xf32>
    %12 = arith.truncf %11 : vector<128x64xf32> to vector<128x64xbf16>
    %c0_12 = arith.constant 0 : index
    %c0_13 = arith.constant 0 : index
    %13 = vector.load %arg8[%c0_12, %c0_13] : memref<64x128xbf16, #tpu.memory_space<vmem>>, vector<64x128xbf16>
    %cst_14 = arith.constant dense<0.000000e+00> : vector<128x128xf32>
    %14 = tpu.matmul %12, %13, %cst_14 {dimension_numbers = #tpu.dot_dimension_numbers<[1], [0], [0], [1], [0, 0, 1, 1], [], []>} : vector<128x64xbf16>, vector<64x128xbf16>, vector<128x128xf32> -> vector<128x128xf32>
    %c0_15 = arith.constant 0 : index
    %c0_16 = arith.constant 0 : index
    %15 = vector.load %arg9[%c0_15, %c0_16] : memref<1x128xf32, #tpu.memory_space<vmem>>, vector<1x128xf32>
    %16 = vector.broadcast %15 : vector<1x128xf32> to vector<128x128xf32>
    %17 = arith.addf %14, %16 : vector<128x128xf32>
    %18 = vector.shape_cast %17 : vector<128x128xf32> to vector<8x16x128xf32>
    %c0_17 = arith.constant 0 : index
    %c0_18 = arith.constant 0 : index
    %c0_19 = arith.constant 0 : index
    %19 = vector.load %arg12[%c0_17, %c0_18, %c0_19] : memref<8x16x128xf32, #tpu.memory_space<vmem>>, vector<8x16x128xf32>
    tpu.vector_store %arg12[%c0_17, %c0_18, %c0_19], %18 {strides = array<i32>} : memref<8x16x128xf32, #tpu.memory_space<vmem>>, vector<8x16x128xf32>,
    %c0_20 = arith.constant 0 : index
    %c0_21 = arith.constant 0 : index
    %20 = vector.load %arg10[%c0_20, %c0_21] : memref<128x128xf32, #tpu.memory_space<vmem>>, vector<128x128xf32>
    %21 = tpu.iota {dimensions = array<i32: 1>} : vector<16x128xi32>
    %c5_i32 = arith.constant 5 : i32
    %22 = vector.broadcast %c5_i32 : i32 to vector<16x128xi32>
    %23 = arith.cmpi eq, %21, %22 : vector<16x128xi32>
    %cst_22 = arith.constant 0.000000e+00 : f32
    %cst_23 = arith.constant -1.000000e+04 : f32
    %24 = vector.broadcast %cst_22 : f32 to vector<16x128xf32>
    %25 = vector.broadcast %cst_23 : f32 to vector<16x128xf32>
    %26 = arith.select %23, %24, %25 : vector<16x128xi1>, vector<16x128xf32>
    %cst_24 = arith.constant 0.000000e+00 : f32
    %27 = vector.broadcast %cst_24 : f32 to vector<16x128xf32>
    %c0_i32_25 = arith.constant 0 : i32
    %c8_i32_26 = arith.constant 8 : i32
    %28 = arith.addi %c0_i32_25, %c8_i32_26 : i32
    %c1_i32_27 = arith.constant 1 : i32
    %29:2 = scf.for %arg16 = %c0_i32_25 to %28 step %c1_i32_27 iter_args(%arg17 = %26, %arg18 = %27) -> (vector<16x128xf32>, vector<16x128xf32>)  : i32 {
      %43 = arith.index_cast %arg16 : i32 to index
      %c0_35 = arith.constant 0 : index
      %c0_36 = arith.constant 0 : index
      %44 = vector.load %arg12[%43, %c0_35, %c0_36] : memref<8x16x128xf32, #tpu.memory_space<vmem>>, vector<1x16x128xf32>
      %45 = vector.shape_cast %44 : vector<1x16x128xf32> to vector<16x128xf32>
      %46 = arith.index_cast %arg16 : i32 to index
      %c0_37 = arith.constant 0 : index
      %c0_38 = arith.constant 0 : index
      %47 = vector.load %arg3[%46, %c0_37, %c0_38] : memref<8x16x1xi32, #tpu.memory_space<vmem>>, vector<1x16x1xi32>
      %48 = vector.shape_cast %47 : vector<1x16x1xi32> to vector<16x1xi32>
      %c0_i32_39 = arith.constant 0 : i32
      %49 = vector.broadcast %c0_i32_39 : i32 to vector<16x1xi32>
      %50 = arith.cmpi ne, %48, %49 : vector<16x1xi32>
      %cst_40 = arith.constant dense<0xFF800000> : vector<16xf32>
      %51 = vector.multi_reduction <maximumf>, %arg17, %cst_40 [1] : vector<16x128xf32> to vector<16xf32>
      %52 = vector.shape_cast %51 : vector<16xf32> to vector<16x1xf32>
      %53 = vector.broadcast %52 : vector<16x1xf32> to vector<16x128xf32>
      %54 = arith.subf %arg17, %53 : vector<16x128xf32>
      %55 = math.exp %54 : vector<16x128xf32>
      %cst_41 = arith.constant dense<0.000000e+00> : vector<16x128xf32>
      %56 = tpu.matmul %55, %20, %cst_41 {dimension_numbers = #tpu.dot_dimension_numbers<[1], [0], [0], [1], [0, 0, 1, 1], [], []>} : vector<16x128xf32>, vector<128x128xf32>, vector<16x128xf32> -> vector<16x128xf32>
      %57 = math.log %56 : vector<16x128xf32>
      %58 = vector.broadcast %52 : vector<16x1xf32> to vector<16x128xf32>
      %59 = arith.addf %58, %57 : vector<16x128xf32>
      %60 = arith.addf %59, %45 : vector<16x128xf32>
      %61 = vector.shape_cast %50 : vector<16x1xi1> to vector<16x1xi1>
      %62 = vector.broadcast %61 : vector<16x1xi1> to vector<16x128xi1>
      %63 = arith.select %62, %60, %arg18 : vector<16x128xi1>, vector<16x128xf32>
      scf.yield %60, %63 : vector<16x128xf32>, vector<16x128xf32>
    }
    %c8_i32_28 = arith.constant 8 : i32
    %c0_29 = arith.constant 0 : index
    %c0_30 = arith.constant 0 : index
    %30 = vector.load %arg11[%c0_29, %c0_30] : memref<1x128xf32, #tpu.memory_space<vmem>>, vector<1x128xf32>
    %31 = vector.broadcast %30 : vector<1x128xf32> to vector<16x128xf32>
    %32 = arith.addf %29#1, %31 : vector<16x128xf32>
    %cst_31 = arith.constant dense<0xFF800000> : vector<16xf32>
    %33 = vector.multi_reduction <maximumf>, %32, %cst_31 [1] : vector<16x128xf32> to vector<16xf32>
    %34 = vector.shape_cast %33 : vector<16xf32> to vector<16x1xf32>
    %35 = vector.broadcast %34 : vector<16x1xf32> to vector<16x128xf32>
    %36 = arith.subf %32, %35 : vector<16x128xf32>
    %37 = math.exp %36 : vector<16x128xf32>
    %cst_32 = arith.constant dense<0.000000e+00> : vector<16xf32>
    %38 = vector.multi_reduction <add>, %37, %cst_32 [1] : vector<16x128xf32> to vector<16xf32>
    %39 = vector.shape_cast %38 : vector<16xf32> to vector<16x1xf32>
    %40 = math.log %39 : vector<16x1xf32>
    %41 = arith.addf %34, %40 : vector<16x1xf32>
    %c0_33 = arith.constant 0 : index
    %c0_34 = arith.constant 0 : index
    %42 = vector.load %arg13[%c0_33, %c0_34] : memref<16x1xf32, #tpu.memory_space<vmem>>, vector<16x1xf32>
    tpu.vector_store %arg13[%c0_33, %c0_34], %41 {strides = array<i32>} : memref<16x1xf32, #tpu.memory_space<vmem>>, vector<16x1xf32>,
    return
  }
  func.func @transform_0(%arg0: i32) -> (i32, i32, i32) {
    %c0_i32 = arith.constant 0 : i32
    %c0_i32_0 = arith.constant 0 : i32
    %c0_i32_1 = arith.constant 0 : i32
    return %c0_i32, %arg0, %c0_i32_0 : i32, i32, i32
  }
  func.func @transform_1(%arg0: i32) -> (i32, i32, i32) {
    %c0_i32 = arith.constant 0 : i32
    %c0_i32_0 = arith.constant 0 : i32
    %c0_i32_1 = arith.constant 0 : i32
    return %c0_i32, %arg0, %c0_i32_0 : i32, i32, i32
  }
  func.func @transform_2(%arg0: i32) -> (i32, i32, i32) {
    %c0_i32 = arith.constant 0 : i32
    %c0_i32_0 = arith.constant 0 : i32
    %c0_i32_1 = arith.constant 0 : i32
    return %c0_i32, %arg0, %c0_i32_0 : i32, i32, i32
  }
  func.func @transform_3(%arg0: i32) -> (i32, i32) {
    %c0_i32 = arith.constant 0 : i32
    %c0_i32_0 = arith.constant 0 : i32
    %c0_i32_1 = arith.constant 0 : i32
    return %c0_i32, %c0_i32_0 : i32, i32
  }
  func.func @transform_4(%arg0: i32) -> (i32, i32) {
    %c0_i32 = arith.constant 0 : i32
    %c0_i32_0 = arith.constant 0 : i32
    %c0_i32_1 = arith.constant 0 : i32
    return %c0_i32, %c0_i32_0 : i32, i32
  }
  func.func @transform_5(%arg0: i32) -> (i32, i32) {
    %c0_i32 = arith.constant 0 : i32
    %c0_i32_0 = arith.constant 0 : i32
    %c0_i32_1 = arith.constant 0 : i32
    return %c0_i32, %c0_i32_0 : i32, i32
  }
  func.func @transform_6(%arg0: i32) -> (i32, i32) {
    %c0_i32 = arith.constant 0 : i32
    %c0_i32_0 = arith.constant 0 : i32
    %c0_i32_1 = arith.constant 0 : i32
    return %c0_i32, %c0_i32_0 : i32, i32
  }
  func.func @transform_7(%arg0: i32) -> (i32, i32) {
    %c0_i32 = arith.constant 0 : i32
    %c0_i32_0 = arith.constant 0 : i32
    %c0_i32_1 = arith.constant 0 : i32
    return %c0_i32, %c0_i32_0 : i32, i32
  }
  func.func @transform_8(%arg0: i32) -> (i32, i32) {
    %c0_i32 = arith.constant 0 : i32
    %c0_i32_0 = arith.constant 0 : i32
    %c0_i32_1 = arith.constant 0 : i32
    return %c0_i32, %c0_i32_0 : i32, i32
  }
  func.func @transform_9(%arg0: i32) -> (i32, i32) {
    %c0_i32 = arith.constant 0 : i32
    %c0_i32_0 = arith.constant 0 : i32
    %c0_i32_1 = arith.constant 0 : i32
    return %c0_i32, %c0_i32_0 : i32, i32
  }
  func.func @transform_10(%arg0: i32) -> (i32, i32) {
    %c0_i32 = arith.constant 0 : i32
    %c0_i32_0 = arith.constant 0 : i32
    %c0_i32_1 = arith.constant 0 : i32
    return %c0_i32, %c0_i32_0 : i32, i32
  }
  func.func @transform_11(%arg0: i32) -> (i32, i32, i32) {
    %c0_i32 = arith.constant 0 : i32
    %c0_i32_0 = arith.constant 0 : i32
    %c0_i32_1 = arith.constant 0 : i32
    return %c0_i32, %arg0, %c0_i32_0 : i32, i32, i32
  }
  func.func @transform_12(%arg0: i32) -> (i32, i32) {
    %c0_i32 = arith.constant 0 : i32
    %c0_i32_0 = arith.constant 0 : i32
    return %arg0, %c0_i32 : i32, i32
  }
}

</mosaic_0001>

<llo_original>
// kernel: bilstm_crf_forward.2
$region0: #{bilstm_crf_forward.2}
  #allocation0 [shape = 'u32[]', space=smem, size = 0x4, offset = 0x4, fixed_abs, tag = 'smem constant byte address 0x4 - core index']
  #allocation1 [shape = 'u32[72,128]{1,0:T(1,128)}', space=vmem, size = 0x9000, scoped, tag = 'internal scratch']
  #allocation2 [shape = 'f32[96,64]{1,0:T(8,128)}', space=vmem, size = 0xc000, scoped, tag = 'scratch operand']
  %s0 = inlined_call_operand.vmem [shape: bf16[6,32,8], index: 0, kind: input, shape index: {}]
  %s1 = inlined_call_operand.vmem [shape: s32[6,32,1], index: 1, kind: input, shape index: {}]
  %s2 = inlined_call_operand.vmem [shape: bf16[8,64], index: 2, kind: input, shape index: {}]
  %s3 = inlined_call_operand.vmem [shape: bf16[8,32], index: 3, kind: input, shape index: {}]
  %s4 = inlined_call_operand.vmem [shape: bf16[8,32], index: 4, kind: input, shape index: {}]
  %s5 = inlined_call_operand.vmem [shape: f32[1,64], index: 5, kind: input, shape index: {}]
  %s6 = inlined_call_operand.vmem [shape: f32[32,16], index: 6, kind: output, shape index: {}]
  %s7 = sld [smem:[#allocation0]]
  $region143: #{bilstm_crf_forward.2} parent=0
    _
  %s9 = ssub.s32 1, %s7
  %s10 = scalar_select 0, %s9, %s7
  $region1: #{bilstm_crf_forward.2} parent=0
    #allocation3 [shape = 'u8[49152]{0}', space=vmem, size = 0xc000, scoped, tag = 'input window, operand 0']
    #allocation4 [shape = 'u8[98304]{0}', space=vmem, size = 0x18000, scoped, tag = 'input window, operand 1']
    loop: start=0, step=1, limit=4
    $region2: #{bilstm_crf_forward.2} parent=1 // loop_pre_header
      _
    $region3: #{bilstm_crf_forward.2} parent=1 // loop_header
      %s12 = sphi 0, %s16
      %p13 = scmp.ge.s32.totalorder %s12, 4
      %s22 = sphi 0, %s24
      %s25 = sphi 0, %s22
      %s26 = sphi 0, %s25
      %s42 = sphi 0, %s26
      %s48 = sphi 0, %s50
      %s51 = sphi 0, %s48
      %s52 = sphi 0, %s51
      %s68 = sphi 0, %s52
      %s72 = sphi 0, %s72
      %s74 = sphi 0, %s72
      %s75 = sphi 0, %s74
      %s89 = sphi 0, %s75
      %s93 = sphi 0, %s93
      %s95 = sphi 0, %s93
      %s96 = sphi 0, %s95
      %s110 = sphi 0, %s96
      %s114 = sphi 0, %s114
      %s116 = sphi 0, %s114
      %s117 = sphi 0, %s116
      %s131 = sphi 0, %s117
      %s135 = sphi 0, %s135
      %s137 = sphi 0, %s135
      %s138 = sphi 0, %s137
      %s152 = sphi 0, %s138
      %s158 = sphi 0, %s160
      %s161 = sphi 0, %s158
      %s162 = sphi 0, %s161
      %s178 = sphi 0, %s162
    $region4: #{bilstm_crf_forward.2} parent=1 // loop_header_branch
      %15 = sbr.rel (%p13) target = $region8
    $region5: #{bilstm_crf_forward.2} parent=1 // loop_body
      %s17 = ssub.s32 %s12, 1
      %s18 = ssub.s32 %s12, 2
      %s19 = sadd.s32 %s12, 1
      %s20 = ssub.s32 %s12, %s19
      %p21 = scmp.eq.s32.totalorder %s20, 0
      %s23 = sadd.s32 %s22, 1
      %s24 = scalar_select %p21, %s22, %s23
      %p27 = pneg %p21
      %p28 = scmp.eq.s32.totalorder %s12, 1
      %p29 = por %p27, %p28
      %p30 = scmp.ne.s32.totalorder %s22, %s25
      %p31 = scmp.eq.s32.totalorder %s12, 0
      %p32 = por %p30, %p31
      %p33 = scmp.ne.s32.totalorder %s22, %s25
      %p34 = scmp.eq.s32.totalorder %s17, 1
      %p35 = por %p33, %p34
      %p36 = scmp.ne.s32.totalorder %s25, %s26
      %p37 = scmp.eq.s32.totalorder %s17, 0
      %p38 = por %p36, %p37
      %p39 = scmp.ne.s32.totalorder %s25, %s26
      %p40 = scmp.eq.s32.totalorder %s18, 1
      %p41 = por %p39, %p40
      %p43 = scmp.ne.s32.totalorder %s26, %s42
      %p44 = scmp.eq.s32.totalorder %s18, 0
      %p45 = por %p43, %p44
      %s46 = ssub.s32 %s12, %s19
      %p47 = scmp.eq.s32.totalorder %s46, 0
      %s49 = sadd.s32 %s48, 1
      %s50 = scalar_select %p47, %s48, %s49
      %p53 = pneg %p47
      %p54 = scmp.eq.s32.totalorder %s12, 1
      %p55 = por %p53, %p54
      %p56 = scmp.ne.s32.totalorder %s48, %s51
      %p57 = scmp.eq.s32.totalorder %s12, 0
      %p58 = por %p56, %p57
      %p59 = scmp.ne.s32.totalorder %s48, %s51
      %p60 = scmp.eq.s32.totalorder %s17, 1
      %p61 = por %p59, %p60
      %p62 = scmp.ne.s32.totalorder %s51, %s52
      %p63 = scmp.eq.s32.totalorder %s17, 0
      %p64 = por %p62, %p63
      %p65 = scmp.ne.s32.totalorder %s51, %s52
      %p66 = scmp.eq.s32.totalorder %s18, 1
      %p67 = por %p65, %p66
      %p69 = scmp.ne.s32.totalorder %s52, %s68
      %p70 = scmp.eq.s32.totalorder %s18, 0
      %p71 = por %p69, %p70
      %s73 = sadd.s32 %s72, 1
      %p76 = scmp.eq.s32.totalorder %s12, 1
      %p77 = scmp.ne.s32.totalorder %s72, %s74
      %p78 = scmp.eq.s32.totalorder %s12, 0
      %p79 = por %p77, %p78
      %p80 = scmp.ne.s32.totalorder %s72, %s74
      %p81 = scmp.eq.s32.totalorder %s17, 1
      %p82 = por %p80, %p81
      %p83 = scmp.ne.s32.totalorder %s74, %s75
      %p84 = scmp.eq.s32.totalorder %s17, 0
      %p85 = por %p83, %p84
      %p86 = scmp.ne.s32.totalorder %s74, %s75
      %p87 = scmp.eq.s32.totalorder %s18, 1
      %p88 = por %p86, %p87
      %p90 = scmp.ne.s32.totalorder %s75, %s89
      %p91 = scmp.eq.s32.totalorder %s18, 0
      %p92 = por %p90, %p91
      %s94 = sadd.s32 %s93, 1
      %p97 = scmp.eq.s32.totalorder %s12, 1
      %p98 = scmp.ne.s32.totalorder %s93, %s95
      %p99 = scmp.eq.s32.totalorder %s12, 0
      %p100 = por %p98, %p99
      %p101 = scmp.ne.s32.totalorder %s93, %s95
      %p102 = scmp.eq.s32.totalorder %s17, 1
      %p103 = por %p101, %p102
      %p104 = scmp.ne.s32.totalorder %s95, %s96
      %p105 = scmp.eq.s32.totalorder %s17, 0
      %p106 = por %p104, %p105
      %p107 = scmp.ne.s32.totalorder %s95, %s96
      %p108 = scmp.eq.s32.totalorder %s18, 1
      %p109 = por %p107, %p108
      %p111 = scmp.ne.s32.totalorder %s96, %s110
      %p112 = scmp.eq.s32.totalorder %s18, 0
      %p113 = por %p111, %p112
      %s115 = sadd.s32 %s114, 1
      %p118 = scmp.eq.s32.totalorder %s12, 1
      %p119 = scmp.ne.s32.totalorder %s114, %s116
      %p120 = scmp.eq.s32.totalorder %s12, 0
      %p121 = por %p119, %p120
      %p122 = scmp.ne.s32.totalorder %s114, %s116
      %p123 = scmp.eq.s32.totalorder %s17, 1
      %p124 = por %p122, %p123
      %p125 = scmp.ne.s32.totalorder %s116, %s117
      %p126 = scmp.eq.s32.totalorder %s17, 0
      %p127 = por %p125, %p126
      %p128 = scmp.ne.s32.totalorder %s116, %s117
      %p129 = scmp.eq.s32.totalorder %s18, 1
      %p130 = por %p128, %p129
      %p132 = scmp.ne.s32.totalorder %s117, %s131
      %p133 = scmp.eq.s32.totalorder %s18, 0
      %p134 = por %p132, %p133
      %s136 = sadd.s32 %s135, 1
      %p139 = scmp.eq.s32.totalorder %s12, 1
      %p140 = scmp.ne.s32.totalorder %s135, %s137
      %p141 = scmp.eq.s32.totalorder %s12, 0
      %p142 = por %p140, %p141
      %p143 = scmp.ne.s32.totalorder %s135, %s137
      %p144 = scmp.eq.s32.totalorder %s17, 1
      %p145 = por %p143, %p144
      %p146 = scmp.ne.s32.totalorder %s137, %s138
      %p147 = scmp.eq.s32.totalorder %s17, 0
      %p148 = por %p146, %p147
      %p149 = scmp.ne.s32.totalorder %s137, %s138
      %p150 = scmp.eq.s32.totalorder %s18, 1
      %p151 = por %p149, %p150
      %p153 = scmp.ne.s32.totalorder %s138, %s152
      %p154 = scmp.eq.s32.totalorder %s18, 0
      %p155 = por %p153, %p154
      %s156 = ssub.s32 %s12, %s19
      %p157 = scmp.eq.s32.totalorder %s156, 0
      %s159 = sadd.s32 %s158, 1
      %s160 = scalar_select %p157, %s158, %s159
      %p163 = pneg %p157
      %p164 = scmp.eq.s32.totalorder %s12, 1
      %p165 = por %p163, %p164
      %p166 = scmp.ne.s32.totalorder %s158, %s161
      %p167 = scmp.eq.s32.totalorder %s12, 0
      %p168 = por %p166, %p167
      %p169 = scmp.ne.s32.totalorder %s158, %s161
      %p170 = scmp.eq.s32.totalorder %s17, 1
      %p171 = por %p169, %p170
      %p172 = scmp.ne.s32.totalorder %s161, %s162
      %p173 = scmp.eq.s32.totalorder %s17, 0
      %p174 = por %p172, %p173
      %p175 = scmp.ne.s32.totalorder %s161, %s162
      %p176 = scmp.eq.s32.totalorder %s18, 1
      %p177 = por %p175, %p176
      %p179 = scmp.ne.s32.totalorder %s162, %s178
      %p180 = scmp.eq.s32.totalorder %s18, 0
      %p181 = por %p179, %p180
      %p182 = scmp.le.s32.totalorder 1, %s12
      %p183 = scmp.lt.s32.totalorder %s12, 3
      %p184 = pnand %p182, %p183
      %p185 = pneg %p184
      // Predicated region
      $region9: #{bilstm_crf_forward.2} parent=5 // pred_check
        _
      $region10: #{bilstm_crf_forward.2} parent=5 // pred_check_branch
        %187 = sbr.rel (%p184) target = $region12
      $region11: #{bilstm_crf_forward.2} parent=5 // pred_region
        %s188 = ssub.s32 %s12, 1
        // Predicated region
        $region13: #{bilstm_crf_forward.2} parent=11 // pred_check
          %p189 = pneg %p85
        $region14: #{bilstm_crf_forward.2} parent=11 // pred_check_branch
          %191 = sbr.rel (%p189) target = $region16
        $region15: #{bilstm_crf_forward.2} parent=11 // pred_region
          _
        $region16: #{bilstm_crf_forward.2} parent=11 // pred_fallthru
          _
        // Predicated region
        $region17: #{bilstm_crf_forward.2} parent=11 // pred_check
          %p192 = pneg %p106
        $region18: #{bilstm_crf_forward.2} parent=11 // pred_check_branch
          %194 = sbr.rel (%p192) target = $region20
        $region19: #{bilstm_crf_forward.2} parent=11 // pred_region
          _
        $region20: #{bilstm_crf_forward.2} parent=11 // pred_fallthru
          _
        // Predicated region
        $region21: #{bilstm_crf_forward.2} parent=11 // pred_check
          %p195 = pneg %p127
        $region22: #{bilstm_crf_forward.2} parent=11 // pred_check_branch
          %197 = sbr.rel (%p195) target = $region24
        $region23: #{bilstm_crf_forward.2} parent=11 // pred_region
          _
        $region24: #{bilstm_crf_forward.2} parent=11 // pred_fallthru
          _
        // Predicated region
        $region25: #{bilstm_crf_forward.2} parent=11 // pred_check
          %p198 = pneg %p148
        $region26: #{bilstm_crf_forward.2} parent=11 // pred_check_branch
          %200 = sbr.rel (%p198) target = $region28
        $region27: #{bilstm_crf_forward.2} parent=11 // pred_region
          _
        $region28: #{bilstm_crf_forward.2} parent=11 // pred_fallthru
          _
      $region12: #{bilstm_crf_forward.2} parent=5 // pred_fallthru
        _
      %p201 = scmp.lt.s32.totalorder %s12, 2
      // Predicated region
      $region29: #{bilstm_crf_forward.2} parent=5 // pred_check
        %p202 = pneg %p201
      $region30: #{bilstm_crf_forward.2} parent=5 // pred_check_branch
        %204 = sbr.rel (%p202) target = $region32
      $region31: #{bilstm_crf_forward.2} parent=5 // pred_region
        // Predicated region
        $region33: #{bilstm_crf_forward.2} parent=31 // pred_check
          %p205 = pneg %p32
        $region34: #{bilstm_crf_forward.2} parent=31 // pred_check_branch
          %207 = sbr.rel (%p205) target = $region36
        $region35: #{bilstm_crf_forward.2} parent=31 // pred_region
          %s208 = sand.u32 %s22, 1
          %s209 = sand.u32 %s22, 1
          %s210 = smul.addr %s209, 48
          %s211 = scalar_lea.vmem [#allocation3], %s210
          %s212 = smul.u32 2, %s12
          %s213 = smul.addr %s212, 4
          %s214 = scalar_lea.vmem %s0, %s213
          // Predicated region
          $region37: #{bilstm_crf_forward.2} parent=35 // pred_check
            _
          $region38: #{bilstm_crf_forward.2} parent=35 // pred_check_branch
            %216 = sbr.rel (0) target = $region40
          $region39: #{bilstm_crf_forward.2} parent=35 // pred_region
            // Predicated region
            $region41: #{bilstm_crf_forward.2} parent=39 // pred_check
              _
            $region42: #{bilstm_crf_forward.2} parent=39 // pred_check_branch
              %218 = sbr.rel target = $region44
            $region43: #{bilstm_crf_forward.2} parent=39 // pred_region
              // Predicated region
              $region56: #{bilstm_crf_forward.2} parent=43 // pred_check
                _
              $region57: #{bilstm_crf_forward.2} parent=43 // pred_check_branch
                %256 = sbr.rel (0) target = $region59
              $region58: #{bilstm_crf_forward.2} parent=43 // pred_region
                loop: start=0, step=1, limit=1
                $region60: #{bilstm_crf_forward.2} parent=58 // loop_pre_header
                  _
                $region61: #{bilstm_crf_forward.2} parent=58 // loop_header
                  %s258 = sphi 0, %s262
                  %p259 = scmp.ge.s32.totalorder %s258, 1
                  %s263 = sphi %s214, %s214
                  %s264 = sphi %s211, %s211
                $region62: #{bilstm_crf_forward.2} parent=58 // loop_header_branch
                  %261 = sbr.rel (%p259) target = $region66
                $region63: #{bilstm_crf_forward.2} parent=58 // loop_body
                  _
                $region64: #{bilstm_crf_forward.2} parent=58 // loop_footer
                  %s262 = sadd.s32 1, %s258
                $region65: #{bilstm_crf_forward.2} parent=58 // loop_footer_branch
                  %257 = sbr.rel target = $region61
                $region66: #{bilstm_crf_forward.2} parent=58 // loop_exit
                  _
                %s266 = ssub.s32 16, 1
                loop: start=0, step=1, limit=1
                $region67: #{bilstm_crf_forward.2} parent=58 // loop_pre_header
                  _
                $region68: #{bilstm_crf_forward.2} parent=58 // loop_header
                  %s268 = sphi 0, %s272
                  %p269 = scmp.ge.s32.totalorder %s268, 1
                  %s273 = sphi %s214, %s214
                  %s274 = sphi %s211, %s211
                $region69: #{bilstm_crf_forward.2} parent=58 // loop_header_branch
                  %271 = sbr.rel (%p269) target = $region73
                $region70: #{bilstm_crf_forward.2} parent=58 // loop_body
                  %v275 = vld [vmem:[%s273] sm:%s266]
                  %276 = vst [vmem:[%s274] sm:%s266] %v275
                  %v277 = vld [vmem:[%s273 + $0x4] sm:%s266]
                  %278 = vst [vmem:[%s274 + $0x4] sm:%s266] %v277
                  %v279 = vld [vmem:[%s273 + $0x10] sm:%s266]
                  %280 = vst [vmem:[%s274 + $0x8] sm:%s266] %v279
                  %v281 = vld [vmem:[%s273 + $0x14] sm:%s266]
                  %282 = vst [vmem:[%s274 + $0xc] sm:%s266] %v281
                  %v283 = vld [vmem:[%s273 + $0x20] sm:%s266]
                  %284 = vst [vmem:[%s274 + $0x10] sm:%s266] %v283
                  %v285 = vld [vmem:[%s273 + $0x24] sm:%s266]
                  %286 = vst [vmem:[%s274 + $0x14] sm:%s266] %v285
                  %v287 = vld [vmem:[%s273 + $0x30] sm:%s266]
                  %288 = vst [vmem:[%s274 + $0x18] sm:%s266] %v287
                  %v289 = vld [vmem:[%s273 + $0x34] sm:%s266]
                  %290 = vst [vmem:[%s274 + $0x1c] sm:%s266] %v289
                  %v291 = vld [vmem:[%s273 + $0x40] sm:%s266]
                  %292 = vst [vmem:[%s274 + $0x20] sm:%s266] %v291
                  %v293 = vld [vmem:[%s273 + $0x44] sm:%s266]
                  %294 = vst [vmem:[%s274 + $0x24] sm:%s266] %v293
                  %v295 = vld [vmem:[%s273 + $0x50] sm:%s266]
                  %296 = vst [vmem:[%s274 + $0x28] sm:%s266] %v295
                  %v297 = vld [vmem:[%s273 + $0x54] sm:%s266]
                  %298 = vst [vmem:[%s274 + $0x2c] sm:%s266] %v297
                $region71: #{bilstm_crf_forward.2} parent=58 // loop_footer
                  %s272 = sadd.s32 1, %s268
                $region72: #{bilstm_crf_forward.2} parent=58 // loop_footer_branch
                  %267 = sbr.rel target = $region68
                $region73: #{bilstm_crf_forward.2} parent=58 // loop_exit
                  _
              $region59: #{bilstm_crf_forward.2} parent=43 // pred_fallthru
                _
            $region44: #{bilstm_crf_forward.2} parent=39 // pred_fallthru
              _
            // Predicated region
            $region45: #{bilstm_crf_forward.2} parent=39 // pred_check
              _
            $region46: #{bilstm_crf_forward.2} parent=39 // pred_check_branch
              %220 = sbr.rel (0) target = $region48
            $region47: #{bilstm_crf_forward.2} parent=39 // pred_region
              %s222 = ssub.s32 16, 1
              loop: start=0, step=1, limit=1
              $region49: #{bilstm_crf_forward.2} parent=47 // loop_pre_header
                _
              $region50: #{bilstm_crf_forward.2} parent=47 // loop_header
                %s224 = sphi 0, %s228
                %p225 = scmp.ge.s32.totalorder %s224, 1
                %s229 = sphi %s214, %s214
                %s230 = sphi %s211, %s211
              $region51: #{bilstm_crf_forward.2} parent=47 // loop_header_branch
                %227 = sbr.rel (%p225) target = $region55
              $region52: #{bilstm_crf_forward.2} parent=47 // loop_body
                %v231 = vld [vmem:[%s229] sm:%s222]
                %232 = vst [vmem:[%s230] sm:%s222] %v231
                %v233 = vld [vmem:[%s229 + $0x4] sm:%s222]
                %234 = vst [vmem:[%s230 + $0x4] sm:%s222] %v233
                %v235 = vld [vmem:[%s229 + $0x10] sm:%s222]
                %236 = vst [vmem:[%s230 + $0x8] sm:%s222] %v235
                %v237 = vld [vmem:[%s229 + $0x14] sm:%s222]
                %238 = vst [vmem:[%s230 + $0xc] sm:%s222] %v237
                %v239 = vld [vmem:[%s229 + $0x20] sm:%s222]
                %240 = vst [vmem:[%s230 + $0x10] sm:%s222] %v239
                %v241 = vld [vmem:[%s229 + $0x24] sm:%s222]
                %242 = vst [vmem:[%s230 + $0x14] sm:%s222] %v241
                %v243 = vld [vmem:[%s229 + $0x30] sm:%s222]
                %244 = vst [vmem:[%s230 + $0x18] sm:%s222] %v243
                %v245 = vld [vmem:[%s229 + $0x34] sm:%s222]
                %246 = vst [vmem:[%s230 + $0x1c] sm:%s222] %v245
                %v247 = vld [vmem:[%s229 + $0x40] sm:%s222]
                %248 = vst [vmem:[%s230 + $0x20] sm:%s222] %v247
                %v249 = vld [vmem:[%s229 + $0x44] sm:%s222]
                %250 = vst [vmem:[%s230 + $0x24] sm:%s222] %v249
                %v251 = vld [vmem:[%s229 + $0x50] sm:%s222]
                %252 = vst [vmem:[%s230 + $0x28] sm:%s222] %v251
                %v253 = vld [vmem:[%s229 + $0x54] sm:%s222]
                %254 = vst [vmem:[%s230 + $0x2c] sm:%s222] %v253
              $region53: #{bilstm_crf_forward.2} parent=47 // loop_footer
                %s228 = sadd.s32 1, %s224
              $region54: #{bilstm_crf_forward.2} parent=47 // loop_footer_branch
                %223 = sbr.rel target = $region50
              $region55: #{bilstm_crf_forward.2} parent=47 // loop_exit
                _
            $region48: #{bilstm_crf_forward.2} parent=39 // pred_fallthru
              _
          $region40: #{bilstm_crf_forward.2} parent=35 // pred_fallthru
            _
          %299 = vnop
        $region36: #{bilstm_crf_forward.2} parent=31 // pred_fallthru
          _
        // Predicated region
        $region74: #{bilstm_crf_forward.2} parent=31 // pred_check
          %p300 = pneg %p58
        $region75: #{bilstm_crf_forward.2} parent=31 // pred_check_branch
          %302 = sbr.rel (%p300) target = $region77
        $region76: #{bilstm_crf_forward.2} parent=31 // pred_region
          %s303 = sand.u32 %s48, 1
          %s304 = sand.u32 %s48, 1
          %s305 = smul.addr %s304, 96
          %s306 = scalar_lea.vmem [#allocation4], %s305
          %s307 = smul.u32 2, %s12
          %s308 = smul.addr %s307, 8
          %s309 = scalar_lea.vmem %s1, %s308
          // Predicated region
          $region78: #{bilstm_crf_forward.2} parent=76 // pred_check
            _
          $region79: #{bilstm_crf_forward.2} parent=76 // pred_check_branch
            %311 = sbr.rel (0) target = $region81
          $region80: #{bilstm_crf_forward.2} parent=76 // pred_region
            // Predicated region
            $region82: #{bilstm_crf_forward.2} parent=80 // pred_check
              _
            $region83: #{bilstm_crf_forward.2} parent=80 // pred_check_branch
              %313 = sbr.rel (0) target = $region85
            $region84: #{bilstm_crf_forward.2} parent=80 // pred_region
              // Predicated region
              $region97: #{bilstm_crf_forward.2} parent=84 // pred_check
                _
              $region98: #{bilstm_crf_forward.2} parent=84 // pred_check_branch
                %351 = sbr.rel (0) target = $region100
              $region99: #{bilstm_crf_forward.2} parent=84 // pred_region
                loop: start=0, step=1, limit=1
                $region101: #{bilstm_crf_forward.2} parent=99 // loop_pre_header
                  _
                $region102: #{bilstm_crf_forward.2} parent=99 // loop_header
                  %s353 = sphi 0, %s357
                  %p354 = scmp.ge.s32.totalorder %s353, 1
                  %s358 = sphi %s309, %s309
                  %s359 = sphi %s306, %s306
                $region103: #{bilstm_crf_forward.2} parent=99 // loop_header_branch
                  %356 = sbr.rel (%p354) target = $region107
                $region104: #{bilstm_crf_forward.2} parent=99 // loop_body
                  %v360 = vld [vmem:[%s358] sm:$0xff]
                  %361 = vst [vmem:[%s359] sm:$0xff] %v360
                  %v362 = vld [vmem:[%s358 + $0x8] sm:$0xff]
                  %363 = vst [vmem:[%s359 + $0x8] sm:$0xff] %v362
                  %v364 = vld [vmem:[%s358 + $0x20] sm:$0xff]
                  %365 = vst [vmem:[%s359 + $0x10] sm:$0xff] %v364
                  %v366 = vld [vmem:[%s358 + $0x28] sm:$0xff]
                  %367 = vst [vmem:[%s359 + $0x18] sm:$0xff] %v366
                  %v368 = vld [vmem:[%s358 + $0x40] sm:$0xff]
                  %369 = vst [vmem:[%s359 + $0x20] sm:$0xff] %v368
                  %v370 = vld [vmem:[%s358 + $0x48] sm:$0xff]
                  %371 = vst [vmem:[%s359 + $0x28] sm:$0xff] %v370
                  %v372 = vld [vmem:[%s358 + $0x60] sm:$0xff]
                  %373 = vst [vmem:[%s359 + $0x30] sm:$0xff] %v372
                  %v374 = vld [vmem:[%s358 + $0x68] sm:$0xff]
                  %375 = vst [vmem:[%s359 + $0x38] sm:$0xff] %v374
                  %v376 = vld [vmem:[%s358 + $0x80] sm:$0xff]
                  %377 = vst [vmem:[%s359 + $0x40] sm:$0xff] %v376
                  %v378 = vld [vmem:[%s358 + $0x88] sm:$0xff]
                  %379 = vst [vmem:[%s359 + $0x48] sm:$0xff] %v378
                  %v380 = vld [vmem:[%s358 + $0xa0] sm:$0xff]
                  %381 = vst [vmem:[%s359 + $0x50] sm:$0xff] %v380
                  %v382 = vld [vmem:[%s358 + $0xa8] sm:$0xff]
                  %383 = vst [vmem:[%s359 + $0x58] sm:$0xff] %v382
                $region105: #{bilstm_crf_forward.2} parent=99 // loop_footer
                  %s357 = sadd.s32 1, %s353
                $region106: #{bilstm_crf_forward.2} parent=99 // loop_footer_branch
                  %352 = sbr.rel target = $region102
                $region107: #{bilstm_crf_forward.2} parent=99 // loop_exit
                  _
              $region100: #{bilstm_crf_forward.2} parent=84 // pred_fallthru
                _
              // Predicated region
              $region108: #{bilstm_crf_forward.2} parent=84 // pred_check
                _
              $region109: #{bilstm_crf_forward.2} parent=84 // pred_check_branch
                %385 = sbr.rel target = $region111
              $region110: #{bilstm_crf_forward.2} parent=84 // pred_region
                _
              $region111: #{bilstm_crf_forward.2} parent=84 // pred_fallthru
                _
            $region85: #{bilstm_crf_forward.2} parent=80 // pred_fallthru
              _
            // Predicated region
            $region86: #{bilstm_crf_forward.2} parent=80 // pred_check
              _
            $region87: #{bilstm_crf_forward.2} parent=80 // pred_check_branch
              %315 = sbr.rel target = $region89
            $region88: #{bilstm_crf_forward.2} parent=80 // pred_region
              %s317 = ssub.s32 256, 1
              loop: start=0, step=1, limit=1
              $region90: #{bilstm_crf_forward.2} parent=88 // loop_pre_header
                _
              $region91: #{bilstm_crf_forward.2} parent=88 // loop_header
                %s319 = sphi 0, %s323
                %p320 = scmp.ge.s32.totalorder %s319, 1
                %s324 = sphi %s309, %s309
                %s325 = sphi %s306, %s306
              $region92: #{bilstm_crf_forward.2} parent=88 // loop_header_branch
                %322 = sbr.rel (%p320) target = $region96
              $region93: #{bilstm_crf_forward.2} parent=88 // loop_body
                %v326 = vld [vmem:[%s324] sm:%s317]
                %327 = vst [vmem:[%s325] sm:%s317] %v326
                %v328 = vld [vmem:[%s324 + $0x8] sm:%s317]
                %329 = vst [vmem:[%s325 + $0x8] sm:%s317] %v328
                %v330 = vld [vmem:[%s324 + $0x20] sm:%s317]
                %331 = vst [vmem:[%s325 + $0x10] sm:%s317] %v330
                %v332 = vld [vmem:[%s324 + $0x28] sm:%s317]
                %333 = vst [vmem:[%s325 + $0x18] sm:%s317] %v332
                %v334 = vld [vmem:[%s324 + $0x40] sm:%s317]
                %335 = vst [vmem:[%s325 + $0x20] sm:%s317] %v334
                %v336 = vld [vmem:[%s324 + $0x48] sm:%s317]
                %337 = vst [vmem:[%s325 + $0x28] sm:%s317] %v336
                %v338 = vld [vmem:[%s324 + $0x60] sm:%s317]
                %339 = vst [vmem:[%s325 + $0x30] sm:%s317] %v338
                %v340 = vld [vmem:[%s324 + $0x68] sm:%s317]
                %341 = vst [vmem:[%s325 + $0x38] sm:%s317] %v340
                %v342 = vld [vmem:[%s324 + $0x80] sm:%s317]
                %343 = vst [vmem:[%s325 + $0x40] sm:%s317] %v342
                %v344 = vld [vmem:[%s324 + $0x88] sm:%s317]
                %345 = vst [vmem:[%s325 + $0x48] sm:%s317] %v344
                %v346 = vld [vmem:[%s324 + $0xa0] sm:%s317]
                %347 = vst [vmem:[%s325 + $0x50] sm:%s317] %v346
                %v348 = vld [vmem:[%s324 + $0xa8] sm:%s317]
                %349 = vst [vmem:[%s325 + $0x58] sm:%s317] %v348
              $region94: #{bilstm_crf_forward.2} parent=88 // loop_footer
                %s323 = sadd.s32 1, %s319
              $region95: #{bilstm_crf_forward.2} parent=88 // loop_footer_branch
                %318 = sbr.rel target = $region91
              $region96: #{bilstm_crf_forward.2} parent=88 // loop_exit
                _
            $region89: #{bilstm_crf_forward.2} parent=80 // pred_fallthru
              _
          $region81: #{bilstm_crf_forward.2} parent=76 // pred_fallthru
            _
          %386 = vnop
        $region77: #{bilstm_crf_forward.2} parent=31 // pred_fallthru
          _
      $region32: #{bilstm_crf_forward.2} parent=5 // pred_fallthru
        _
      %p387 = scmp.le.s32.totalorder 1, %s12
      %p388 = scmp.lt.s32.totalorder %s12, 3
      %p389 = pnand %p387, %p388
      %p390 = pneg %p389
      // Predicated region
      $region112: #{bilstm_crf_forward.2} parent=5 // pred_check
        _
      $region113: #{bilstm_crf_forward.2} parent=5 // pred_check_branch
        %392 = sbr.rel (%p389) target = $region115
      $region114: #{bilstm_crf_forward.2} parent=5 // pred_region
        %s393 = ssub.s32 %s12, 1
        %s394 = sand.u32 %s25, 1
        %s395 = sand.u32 %s25, 1
        %s396 = smul.addr %s395, 48
        %s397 = scalar_lea.vmem [#allocation3], %s396
        // Predicated region
        $region116: #{bilstm_crf_forward.2} parent=114 // pred_check
          %p398 = pneg %p38
        $region117: #{bilstm_crf_forward.2} parent=114 // pred_check_branch
          %400 = sbr.rel (%p398) target = $region119
        $region118: #{bilstm_crf_forward.2} parent=114 // pred_region
          _
        $region119: #{bilstm_crf_forward.2} parent=114 // pred_fallthru
          _
        %s401 = sand.u32 %s51, 1
        %s402 = sand.u32 %s51, 1
        %s403 = smul.addr %s402, 96
        %s404 = scalar_lea.vmem [#allocation4], %s403
        // Predicated region
        $region120: #{bilstm_crf_forward.2} parent=114 // pred_check
          %p405 = pneg %p64
        $region121: #{bilstm_crf_forward.2} parent=114 // pred_check_branch
          %407 = sbr.rel (%p405) target = $region123
        $region122: #{bilstm_crf_forward.2} parent=114 // pred_region
          _
        $region123: #{bilstm_crf_forward.2} parent=114 // pred_fallthru
          _
        %s408 = sand.u32 %s25, 1
        %s409 = sand.u32 %s25, 1
        %s410 = smul.addr %s409, 48
        %s411 = scalar_lea.vmem [#allocation3], %s410
        %p412 = pneg %p38
        %p413 = pneg %p35
        %s414 = sand.u32 %s51, 1
        %s415 = sand.u32 %s51, 1
        %s416 = smul.addr %s415, 96
        %s417 = scalar_lea.vmem [#allocation4], %s416
        %p418 = pneg %p64
        %p419 = pneg %p61
        %p420 = pneg %p85
        %p421 = pneg %p82
        %p422 = pneg %p106
        %p423 = pneg %p103
        %p424 = pneg %p127
        %p425 = pneg %p124
        %p426 = pneg %p148
        %p427 = pneg %p145
        %p428 = pneg %p174
        %p429 = pneg %p171
        %s430 = smul.u32 2, %s17
        %p431 = scmp.lt.s32.totalorder %s430, 3
        %s432 = scalar_select %p431, %s430, 3
        %s433 = smul.addr %s432, 8
        %s434 = scalar_lea.vmem %s6, %s433
        %s435 = smul.u32 2, %s17
        %s436 = smul.u32 2, %s17
        %s437 = smul.u32 2, %s17
        %p438 = scmp.lt.s32.totalorder %s437, 3
        %s439 = scalar_select %p438, %s437, 3
        %s440 = smul.addr %s439, 8
        %s441 = scalar_lea.vmem %s6, %s440
        %s442 = smul.u32 2, %s17
        %v444 = vld [vmem:[%s397] sm:$0xf]
        %v445 = vld [vmem:[%s397 + $0x4] sm:$0xf]
        %v446 = vld [vmem:[%s397 + $0x8] sm:$0xf]
        %v447 = vld [vmem:[%s397 + $0xc] sm:$0xf]
        %v448 = vld [vmem:[%s397 + $0x10] sm:$0xf]
        %v449 = vld [vmem:[%s397 + $0x14] sm:$0xf]
        %v450 = vld [vmem:[%s397 + $0x18] sm:$0xf]
        %v451 = vld [vmem:[%s397 + $0x1c] sm:$0xf]
        %v452 = vld [vmem:[%s397 + $0x20] sm:$0xf]
        %v453 = vld [vmem:[%s397 + $0x24] sm:$0xf]
        %v454 = vld [vmem:[%s397 + $0x28] sm:$0xf]
        %v455 = vld [vmem:[%s397 + $0x2c] sm:$0xf]
        %v456 = vld [vmem:[%s2] sm:$0xf]
        %v457 = vld [vmem:[%s5] sm:$0x1]
        %v459 = vperm.slane %v457, 0
        %v473 = vunpack.c.l.b16 %v444
        %v474 = vunpack.c.l.b16 %v445
        %v475 = vunpack.c.l.b16 %v446
        %v476 = vunpack.c.l.b16 %v447
        %v477 = vunpack.c.l.b16 %v448
        %v478 = vunpack.c.l.b16 %v449
        %v479 = vunpack.c.l.b16 %v450
        %v480 = vunpack.c.l.b16 %v451
        %v481 = vunpack.c.l.b16 %v452
        %v482 = vunpack.c.l.b16 %v453
        %v483 = vunpack.c.l.b16 %v454
        %v484 = vunpack.c.l.b16 %v455
        %v485 = vpack.c.b16 %v474, %v473
        %v486 = vpack.c.b16 %v476, %v475
        %v487 = vpack.c.b16 %v478, %v477
        %v488 = vpack.c.b16 %v480, %v479
        %v489 = vpack.c.b16 %v482, %v481
        %v490 = vpack.c.b16 %v484, %v483
        %vm491 = vcmask 64512
        %v493 = vsel %vm491, %v485, 0
        %v496 = vsel %vm491, %v486, 0
        %v499 = vsel %vm491, %v487, 0
        %v502 = vsel %vm491, %v488, 0
        %v505 = vsel %vm491, %v489, 0
        %v508 = vsel %vm491, %v490, 0
        %vm510 = vcmask 1043456
        %v512 = vsel %vm510, %v456, 0
        %514 = vmatpush.bf16.msra.mxu0 0
        %515 = vmatpush.bf16.msra.mxu0 0
        %516 = vmatpush.bf16.msra.mxu0 0
        %517 = vmatpush.bf16.msra.mxu0 0
        %518 = vmatpush.bf16.msra.mxu0 0
        %519 = vmatpush.bf16.msra.mxu0 0
        %520 = vmatpush.bf16.msra.mxu0 0
        %521 = vmatpush.bf16.msra.mxu0 %v512
        %522 = vmatmul.bf16.gmra.mxu0 %v493
        %v523 = vpop.f32.mrf.mxu0
        %v524 = vadd.f32 %v459, %v523
        %v525 = vpop.f32.mrf.mxu0
        %v526 = vadd.f32 %v459, %v525
        %527 = vmatmul.bf16.gmra.mxu0 %v496
        %v528 = vpop.f32.mrf.mxu0
        %v529 = vadd.f32 %v459, %v528
        %v530 = vpop.f32.mrf.mxu0
        %v531 = vadd.f32 %v459, %v530
        %532 = vmatmul.bf16.gmra.mxu0 %v499
        %v533 = vpop.f32.mrf.mxu0
        %v534 = vadd.f32 %v459, %v533
        %v535 = vpop.f32.mrf.mxu0
        %v536 = vadd.f32 %v459, %v535
        %537 = vmatmul.bf16.gmra.mxu0 %v502
        %v538 = vpop.f32.mrf.mxu0
        %v539 = vadd.f32 %v459, %v538
        %v540 = vpop.f32.mrf.mxu0
        %v541 = vadd.f32 %v459, %v540
        %542 = vmatmul.bf16.gmra.mxu0 %v505
        %v543 = vpop.f32.mrf.mxu0
        %v544 = vadd.f32 %v459, %v543
        %v545 = vpop.f32.mrf.mxu0
        %v546 = vadd.f32 %v459, %v545
        %547 = vmatmul.bf16.gmra.mxu0 %v508
        %v548 = vpop.f32.mrf.mxu0
        %v549 = vadd.f32 %v459, %v548
        %v550 = vpop.f32.mrf.mxu0
        %v551 = vadd.f32 %v459, %v550
        %552 = vdwg.mxu0
        %vm553 = vcmask 523264
        %554 = vst.msk [vmem:[#allocation2] sm:$0xff] %vm553, %v524
        %555 = vst.msk [vmem:[#allocation2 + $0x8] sm:$0xff] %vm553, %v526
        %556 = vst.msk [vmem:[#allocation2 + $0x10] sm:$0xff] %vm553, %v529
        %557 = vst.msk [vmem:[#allocation2 + $0x18] sm:$0xff] %vm553, %v531
        %558 = vst.msk [vmem:[#allocation2 + $0x20] sm:$0xff] %vm553, %v534
        %559 = vst.msk [vmem:[#allocation2 + $0x28] sm:$0xff] %vm553, %v536
        %560 = vst.msk [vmem:[#allocation2 + $0x30] sm:$0xff] %vm553, %v539
        %561 = vst.msk [vmem:[#allocation2 + $0x38] sm:$0xff] %vm553, %v541
        %562 = vst.msk [vmem:[#allocation2 + $0x40] sm:$0xff] %vm553, %v544
        %563 = vst.msk [vmem:[#allocation2 + $0x48] sm:$0xff] %vm553, %v546
        %564 = vst.msk [vmem:[#allocation2 + $0x50] sm:$0xff] %vm553, %v549
        %565 = vst.msk [vmem:[#allocation2 + $0x58] sm:$0xff] %vm553, %v551
        loop: start=0, step=1, limit=6
        $region124: #{bilstm_crf_forward.2} parent=114 // loop_pre_header
          _
        $region125: #{bilstm_crf_forward.2} parent=114 // loop_header
          %s567 = sphi 0, %s571
          %p568 = scmp.ge.s32.totalorder %s567, 6
          %v572 = vphi 0.0, %v819
          %v573 = vphi 0.0, %v820
          %v574 = vphi 0.0, %v821
          %v575 = vphi 0.0, %v822
          %v576 = vphi 0.0, %v833
          %v577 = vphi 0.0, %v834
          %v578 = vphi 0.0, %v835
          %v579 = vphi 0.0, %v836
        $region126: #{bilstm_crf_forward.2} parent=114 // loop_header_branch
          %570 = sbr.rel (%p568) target = $region130
        $region127: #{bilstm_crf_forward.2} parent=114 // loop_body
          %s580 = ssub.s32 5, %s567
          %s581 = smul.u32 %s567, 16
          %s582 = smul.u32 %s580, 16
          %v583 = vpack.c.bf16 %v573, %v572
          %v584 = vld [vmem:[%s3] sm:$0xf]
          %586 = vrot.lane.b32.xlu0 %v583, 112
          %v587 = vpop.permute.xlu0 %586
          %v589 = vsel %vm491, %v587, 0
          %v592 = vsel %vm510, %v584, 0
          %594 = vmatpush.bf16.msra.mxu0 0
          %595 = vmatpush.bf16.msra.mxu0 0
          %596 = vmatpush.bf16.msra.mxu0 0
          %597 = vmatpush.bf16.msra.mxu0 0
          %598 = vmatpush.bf16.msra.mxu0 0
          %599 = vmatpush.bf16.msra.mxu0 0
          %600 = vmatpush.bf16.msra.mxu0 0
          %601 = vmatpush.bf16.msra.mxu0 %v592
          %602 = vmatmul.bf16.gmra.mxu0 %v589
          %v603 = vpop.f32.mrf.mxu0
          %v604 = vadd.f32 0.0, %v603
          %v605 = vpop.f32.mrf.mxu0
          %v606 = vadd.f32 0.0, %v605
          %607 = vdwg.mxu0
          %v608 = vpack.c.bf16 %v577, %v576
          %v609 = vld [vmem:[%s4] sm:$0xf]
          %611 = vrot.lane.b32.xlu0 %v608, 80
          %v612 = vpop.permute.xlu0 %611
          %v614 = vsel %vm491, %v612, 0
          %v617 = vsel %vm510, %v609, 0
          %619 = vmatpush.bf16.msra.mxu0 0
          %620 = vmatpush.bf16.msra.mxu0 0
          %621 = vmatpush.bf16.msra.mxu0 0
          %622 = vmatpush.bf16.msra.mxu0 0
          %623 = vmatpush.bf16.msra.mxu0 0
          %624 = vmatpush.bf16.msra.mxu0 0
          %625 = vmatpush.bf16.msra.mxu0 0
          %626 = vmatpush.bf16.msra.mxu0 %v617
          %627 = vmatmul.bf16.gmra.mxu0 %v614
          %v628 = vpop.f32.mrf.mxu0
          %v629 = vadd.f32 0.0, %v628
          %v630 = vpop.f32.mrf.mxu0
          %v631 = vadd.f32 0.0, %v630
          %632 = vdwg.mxu0
          %s633 = scalar_lea.vmem [#allocation2], %s581
          %v634 = vld [vmem:[%s633] sm:$0xff]
          %v635 = vld [vmem:[%s633 + $0x8] sm:$0xff]
          %v636 = vadd.f32 %v634, %v604
          %v637 = vadd.f32 %v635, %v606
          %s638 = scalar_lea.vmem [#allocation2], %s582
          %v639 = vld [vmem:[%s638] sm:$0xff]
          %v640 = vld [vmem:[%s638 + $0x8] sm:$0xff]
          %643 = vrot.lane.b32.xlu0 %v629, 32
          %v644 = vpop.permute.xlu0 %643
          %645 = vrot.lane.b32.xlu0 %v631, 32
          %v646 = vpop.permute.xlu0 %645
          %v649 = vadd.f32 %v639, %v644
          %v650 = vadd.f32 %v640, %v646
          %v651 = vxor.u32 %v636, 2147483648
          %v652 = vxor.u32 %v637, 2147483648
          %v653 = vmul.f32 %v651, 1.442695
          %v654 = vpow.pop %v653
          %v655 = vmul.f32 %v652, 1.442695
          %v656 = vpow.pop %v655
          %v657 = vadd.f32 %v654, 1.0
          %v658 = vadd.f32 %v656, 1.0
          %v659 = vrcp.pop %v657
          %v660 = vmul.f32 %v657, %v659
          %v661 = vsub.f32 1.0, %v660
          %v662 = vmul.f32 %v659, %v661
          %v663 = vadd.f32 %v659, %v662
          %vm664 = vweird.f32 %v657
          %vm665 = vweird.f32 %v659
          %vm666 = vmor %vm664, %vm665
          %v667 = vsel %vm666, %v659, %v663
          %v668 = vand.u32 2147483647, %v657
          %vm669 = vcmp.eq.f32.partialorder %v668, 8.507059e+37
          %v670 = vand.u32 %v657, 2147483648
          %v671 = vor.u32 1.1754944e-38, %v670
          %v672 = vsel %vm669, %v671, %v667
          %v673 = vmul.f32 1.0, %v672
          %v674 = vrcp.pop %v658
          %v675 = vmul.f32 %v658, %v674
          %v676 = vsub.f32 1.0, %v675
          %v677 = vmul.f32 %v674, %v676
          %v678 = vadd.f32 %v674, %v677
          %vm679 = vweird.f32 %v658
          %vm680 = vweird.f32 %v674
          %vm681 = vmor %vm679, %vm680
          %v682 = vsel %vm681, %v674, %v678
          %v683 = vand.u32 2147483647, %v658
          %vm684 = vcmp.eq.f32.partialorder %v683, 8.507059e+37
          %v685 = vand.u32 %v658, 2147483648
          %v686 = vor.u32 1.1754944e-38, %v685
          %v687 = vsel %vm684, %v686, %v682
          %v688 = vmul.f32 1.0, %v687
          %v689 = vtanh.pop %v636
          %v690 = vtanh.pop %v637
          %v691 = vxor.u32 %v649, 2147483648
          %v692 = vxor.u32 %v650, 2147483648
          %v693 = vmul.f32 %v691, 1.442695
          %v694 = vpow.pop %v693
          %v695 = vmul.f32 %v692, 1.442695
          %v696 = vpow.pop %v695
          %v697 = vadd.f32 %v694, 1.0
          %v698 = vadd.f32 %v696, 1.0
          %v699 = vrcp.pop %v697
          %v700 = vmul.f32 %v697, %v699
          %v701 = vsub.f32 1.0, %v700
          %v702 = vmul.f32 %v699, %v701
          %v703 = vadd.f32 %v699, %v702
          %vm704 = vweird.f32 %v697
          %vm705 = vweird.f32 %v699
          %vm706 = vmor %vm704, %vm705
          %v707 = vsel %vm706, %v699, %v703
          %v708 = vand.u32 2147483647, %v697
          %vm709 = vcmp.eq.f32.partialorder %v708, 8.507059e+37
          %v710 = vand.u32 %v697, 2147483648
          %v711 = vor.u32 1.1754944e-38, %v710
          %v712 = vsel %vm709, %v711, %v707
          %v713 = vmul.f32 1.0, %v712
          %v714 = vrcp.pop %v698
          %v715 = vmul.f32 %v698, %v714
          %v716 = vsub.f32 1.0, %v715
          %v717 = vmul.f32 %v714, %v716
          %v718 = vadd.f32 %v714, %v717
          %vm719 = vweird.f32 %v698
          %vm720 = vweird.f32 %v714
          %vm721 = vmor %vm719, %vm720
          %v722 = vsel %vm721, %v714, %v718
          %v723 = vand.u32 2147483647, %v698
          %vm724 = vcmp.eq.f32.partialorder %v723, 8.507059e+37
          %v725 = vand.u32 %v698, 2147483648
          %v726 = vor.u32 1.1754944e-38, %v725
          %v727 = vsel %vm724, %v726, %v722
          %v728 = vmul.f32 1.0, %v727
          %v729 = vtanh.pop %v649
          %v730 = vtanh.pop %v650
          %v731 = vmul.f32 %v673, %v574
          %v732 = vmul.f32 %v688, %v575
          %735 = vrot.lane.b32.xlu0 %v689, 104
          %v736 = vpop.permute.xlu0 %735
          %737 = vrot.lane.b32.xlu0 %v690, 104
          %v738 = vpop.permute.xlu0 %737
          %v741 = vmul.f32 %v673, %v736
          %v742 = vmul.f32 %v688, %v738
          %745 = vrot.lane.b32.xlu0 %v741, 8
          %v746 = vpop.permute.xlu0 %745
          %747 = vrot.lane.b32.xlu0 %v742, 8
          %v748 = vpop.permute.xlu0 %747
          %v751 = vadd.f32 %v731, %v746
          %v752 = vadd.f32 %v732, %v748
          %v753 = vtanh.pop %v751
          %v754 = vtanh.pop %v752
          %757 = vrot.lane.b32.xlu0 %v753, 8
          %v758 = vpop.permute.xlu0 %757
          %759 = vrot.lane.b32.xlu0 %v754, 8
          %v760 = vpop.permute.xlu0 %759
          %v763 = vmul.f32 %v673, %v758
          %v764 = vmul.f32 %v688, %v760
          %v765 = vmul.f32 %v713, %v578
          %v766 = vmul.f32 %v728, %v579
          %769 = vrot.lane.b32.xlu0 %v729, 104
          %v770 = vpop.permute.xlu0 %769
          %771 = vrot.lane.b32.xlu0 %v730, 104
          %v772 = vpop.permute.xlu0 %771
          %v775 = vmul.f32 %v713, %v770
          %v776 = vmul.f32 %v728, %v772
          %779 = vrot.lane.b32.xlu0 %v775, 8
          %v780 = vpop.permute.xlu0 %779
          %781 = vrot.lane.b32.xlu0 %v776, 8
          %v782 = vpop.permute.xlu0 %781
          %v785 = vadd.f32 %v765, %v780
          %v786 = vadd.f32 %v766, %v782
          %v787 = vtanh.pop %v785
          %v788 = vtanh.pop %v786
          %791 = vrot.lane.b32.xlu0 %v787, 8
          %v792 = vpop.permute.xlu0 %791
          %793 = vrot.lane.b32.xlu0 %v788, 8
          %v794 = vpop.permute.xlu0 %793
          %v797 = vmul.f32 %v713, %v792
          %v798 = vmul.f32 %v728, %v794
          %s799 = scalar_lea.vmem %s404, %s581 [#allocation4]
          %v800 = vld [vmem:[%s799] sm:$0xff]
          %v801 = vld [vmem:[%s799 + $0x8] sm:$0xff]
          %vm802 = vcmp.ne.s32.totalorder %v800, 0
          %vm803 = vcmp.ne.s32.totalorder %v801, 0
          %s804 = scalar_lea.vmem %s404, %s582 [#allocation4]
          %v805 = vld [vmem:[%s804] sm:$0xff]
          %v806 = vld [vmem:[%s804 + $0x8] sm:$0xff]
          %vm807 = vcmp.ne.s32.totalorder %v805, 0
          %vm808 = vcmp.ne.s32.totalorder %v806, 0
          %v809 = vsel %vm802, 1, 0
          %v810 = vsel %vm803, 1, 0
          %811 = vset.pattern.permute.xlu0 0
          %812 = vperm.xlu0 %811, %v809
          %v813 = vpop.permute.xlu0 %812
          %814 = vset.pattern.permute.xlu0 0
          %815 = vperm.xlu0 %814, %v810
          %v816 = vpop.permute.xlu0 %815
          %vm817 = vcmp.eq.s32.totalorder %v813, 1
          %vm818 = vcmp.eq.s32.totalorder %v816, 1
          %v819 = vsel %vm817, %v763, %v572
          %v820 = vsel %vm818, %v764, %v573
          %v821 = vsel %vm817, %v751, %v574
          %v822 = vsel %vm818, %v752, %v575
          %v823 = vsel %vm807, 1, 0
          %v824 = vsel %vm808, 1, 0
          %825 = vset.pattern.permute.xlu0 0
          %826 = vperm.xlu0 %825, %v823
          %v827 = vpop.permute.xlu0 %826
          %828 = vset.pattern.permute.xlu0 0
          %829 = vperm.xlu0 %828, %v824
          %v830 = vpop.permute.xlu0 %829
          %vm831 = vcmp.eq.s32.totalorder %v827, 1
          %vm832 = vcmp.eq.s32.totalorder %v830, 1
          %v833 = vsel %vm831, %v797, %v576
          %v834 = vsel %vm832, %v798, %v577
          %v835 = vsel %vm831, %v785, %v578
          %v836 = vsel %vm832, %v786, %v579
        $region128: #{bilstm_crf_forward.2} parent=114 // loop_footer
          %s571 = sadd.s32 1, %s567
        $region129: #{bilstm_crf_forward.2} parent=114 // loop_footer_branch
          %566 = sbr.rel target = $region125
        $region130: #{bilstm_crf_forward.2} parent=114 // loop_exit
          _
        %839 = vrot.lane.b32.xlu0 %v572, 112
        %v840 = vpop.permute.xlu0 %839
        %841 = vrot.lane.b32.xlu0 %v573, 112
        %v842 = vpop.permute.xlu0 %841
        %847 = vrot.lane.b32.xlu0 %v576, 88
        %v848 = vpop.permute.xlu0 %847
        %849 = vrot.lane.b32.xlu0 %v577, 88
        %v850 = vpop.permute.xlu0 %849
        %v853 = vsel %vm491, %v840, %v848
        %v854 = vsel %vm491, %v842, %v850
        %vm855 = vcmask 130048
        %856 = vst.msk [vmem:[%s441] sm:$0xff] %vm855, %v853
        %857 = vst.msk [vmem:[%s441 + $0x8] sm:$0xff] %vm855, %v854
        %s858 = smul.u32 2, %s17
        %p859 = scmp.lt.s32.totalorder %s858, 3
        %s860 = scalar_select %p859, %s858, 3
        %s861 = smul.addr %s860, 8
        %s862 = scalar_lea.vmem %s6, %s861
        // Predicated region
        $region131: #{bilstm_crf_forward.2} parent=114 // pred_check
          %p863 = pneg %p171
        $region132: #{bilstm_crf_forward.2} parent=114 // pred_check_branch
          %865 = sbr.rel (%p863) target = $region134
        $region133: #{bilstm_crf_forward.2} parent=114 // pred_region
          %s866 = smul.u32 2, %s17
        $region134: #{bilstm_crf_forward.2} parent=114 // pred_fallthru
          _
      $region115: #{bilstm_crf_forward.2} parent=5 // pred_fallthru
        _
      %p867 = scmp.le.s32.totalorder 2, %s12
      // Predicated region
      $region135: #{bilstm_crf_forward.2} parent=5 // pred_check
        %p868 = pneg %p867
      $region136: #{bilstm_crf_forward.2} parent=5 // pred_check_branch
        %870 = sbr.rel (%p868) target = $region138
      $region137: #{bilstm_crf_forward.2} parent=5 // pred_region
        %s871 = ssub.s32 %s12, 2
        // Predicated region
        $region139: #{bilstm_crf_forward.2} parent=137 // pred_check
          %p872 = pneg %p177
        $region140: #{bilstm_crf_forward.2} parent=137 // pred_check_branch
          %874 = sbr.rel (%p872) target = $region142
        $region141: #{bilstm_crf_forward.2} parent=137 // pred_region
          %s875 = smul.u32 2, %s18
          %p876 = scmp.lt.s32.totalorder %s875, 3
          %s877 = scalar_select %p876, %s875, 3
          %s878 = smul.addr %s877, 8
          %s879 = scalar_lea.vmem %s6, %s878
        $region142: #{bilstm_crf_forward.2} parent=137 // pred_fallthru
          _
      $region138: #{bilstm_crf_forward.2} parent=5 // pred_fallthru
        _
    $region6: #{bilstm_crf_forward.2} parent=1 // loop_footer
      %s16 = sadd.s32 1, %s12
    $region7: #{bilstm_crf_forward.2} parent=1 // loop_footer_branch
      %11 = sbr.rel target = $region3
    $region8: #{bilstm_crf_forward.2} parent=1 // loop_exit
      _

// kernel: bilstm_crf_forward.3
$region0: #{bilstm_crf_forward.3}
  #allocation0 [shape = 'u32[]', space=smem, size = 0x4, offset = 0x4, fixed_abs, tag = 'smem constant byte address 0x4 - core index']
  #allocation1 [shape = 'u32[72,128]{1,0:T(1,128)}', space=vmem, size = 0x9000, scoped, tag = 'internal scratch']
  #allocation2 [shape = 'f32[128,256]{1,0:T(8,128)}', space=vmem, size = 0x20000, scoped, tag = 'scratch operand']
  #allocation3 [shape = 'f32[128,64]{1,0:T(8,128)}', space=vmem, size = 0x10000, scoped, tag = 'scratch operand']
  %s0 = inlined_call_operand.vmem [shape: bf16[8,16,48], index: 0, kind: input, shape index: {}]
  %s1 = inlined_call_operand.vmem [shape: s32[8,16,1], index: 1, kind: input, shape index: {}]
  %s2 = inlined_call_operand.vmem [shape: s32[8,16,1], index: 2, kind: input, shape index: {}]
  %s3 = inlined_call_operand.vmem [shape: bf16[48,256], index: 3, kind: input, shape index: {}]
  %s4 = inlined_call_operand.vmem [shape: bf16[32,128], index: 4, kind: input, shape index: {}]
  %s5 = inlined_call_operand.vmem [shape: bf16[32,128], index: 5, kind: input, shape index: {}]
  %s6 = inlined_call_operand.vmem [shape: f32[1,256], index: 6, kind: input, shape index: {}]
  %s7 = inlined_call_operand.vmem [shape: bf16[64,128], index: 7, kind: input, shape index: {}]
  %s8 = inlined_call_operand.vmem [shape: f32[1,128], index: 8, kind: input, shape index: {}]
  %s9 = inlined_call_operand.vmem [shape: f32[128,128], index: 9, kind: input, shape index: {}]
  %s10 = inlined_call_operand.vmem [shape: f32[1,128], index: 10, kind: input, shape index: {}]
  %s11 = inlined_call_operand.vmem [shape: f32[8,16,128], index: 11, kind: output, shape index: {0}]
  %s12 = inlined_call_operand.vmem [shape: f32[16,1], index: 12, kind: output, shape index: {1}]
  %13 = xla_tuple %s11, %s12
  %s14 = sld [smem:[#allocation0]]
  $region76: #{bilstm_crf_forward.3} parent=0
    _
  %s16 = ssub.s32 1, %s14
  %s17 = scalar_select 0, %s16, %s14
  // Predicated region
  $region2: #{bilstm_crf_forward.3} parent=0 // pred_check
    _
  $region3: #{bilstm_crf_forward.3} parent=0 // pred_check_branch
    %19 = sbr.rel (0) target = $region5
  $region4: #{bilstm_crf_forward.3} parent=0 // pred_region
    _
  $region5: #{bilstm_crf_forward.3} parent=0 // pred_fallthru
    _
  // Predicated region
  $region6: #{bilstm_crf_forward.3} parent=0 // pred_check
    _
  $region7: #{bilstm_crf_forward.3} parent=0 // pred_check_branch
    %21 = sbr.rel (0) target = $region9
  $region8: #{bilstm_crf_forward.3} parent=0 // pred_region
    _
  $region9: #{bilstm_crf_forward.3} parent=0 // pred_fallthru
    _
  // Predicated region
  $region10: #{bilstm_crf_forward.3} parent=0 // pred_check
    _
  $region11: #{bilstm_crf_forward.3} parent=0 // pred_check_branch
    %23 = sbr.rel (0) target = $region13
  $region12: #{bilstm_crf_forward.3} parent=0 // pred_region
    _
  $region13: #{bilstm_crf_forward.3} parent=0 // pred_fallthru
    _
  // Predicated region
  $region14: #{bilstm_crf_forward.3} parent=0 // pred_check
    _
  $region15: #{bilstm_crf_forward.3} parent=0 // pred_check_branch
    %25 = sbr.rel (0) target = $region17
  $region16: #{bilstm_crf_forward.3} parent=0 // pred_region
    _
  $region17: #{bilstm_crf_forward.3} parent=0 // pred_fallthru
    _
  // Predicated region
  $region18: #{bilstm_crf_forward.3} parent=0 // pred_check
    _
  $region19: #{bilstm_crf_forward.3} parent=0 // pred_check_branch
    %27 = sbr.rel (0) target = $region21
  $region20: #{bilstm_crf_forward.3} parent=0 // pred_region
    _
  $region21: #{bilstm_crf_forward.3} parent=0 // pred_fallthru
    _
  // Predicated region
  $region22: #{bilstm_crf_forward.3} parent=0 // pred_check
    _
  $region23: #{bilstm_crf_forward.3} parent=0 // pred_check_branch
    %29 = sbr.rel (0) target = $region25
  $region24: #{bilstm_crf_forward.3} parent=0 // pred_region
    _
  $region25: #{bilstm_crf_forward.3} parent=0 // pred_fallthru
    _
  // Predicated region
  $region26: #{bilstm_crf_forward.3} parent=0 // pred_check
    _
  $region27: #{bilstm_crf_forward.3} parent=0 // pred_check_branch
    %31 = sbr.rel (0) target = $region29
  $region28: #{bilstm_crf_forward.3} parent=0 // pred_region
    _
  $region29: #{bilstm_crf_forward.3} parent=0 // pred_fallthru
    _
  // Predicated region
  $region30: #{bilstm_crf_forward.3} parent=0 // pred_check
    _
  $region31: #{bilstm_crf_forward.3} parent=0 // pred_check_branch
    %33 = sbr.rel (0) target = $region33
  $region32: #{bilstm_crf_forward.3} parent=0 // pred_region
    _
  $region33: #{bilstm_crf_forward.3} parent=0 // pred_fallthru
    _
  // Predicated region
  $region34: #{bilstm_crf_forward.3} parent=0 // pred_check
    _
  $region35: #{bilstm_crf_forward.3} parent=0 // pred_check_branch
    %35 = sbr.rel (0) target = $region37
  $region36: #{bilstm_crf_forward.3} parent=0 // pred_region
    _
  $region37: #{bilstm_crf_forward.3} parent=0 // pred_fallthru
    _
  // Predicated region
  $region38: #{bilstm_crf_forward.3} parent=0 // pred_check
    _
  $region39: #{bilstm_crf_forward.3} parent=0 // pred_check_branch
    %37 = sbr.rel (0) target = $region41
  $region40: #{bilstm_crf_forward.3} parent=0 // pred_region
    _
  $region41: #{bilstm_crf_forward.3} parent=0 // pred_fallthru
    _
  // Predicated region
  $region42: #{bilstm_crf_forward.3} parent=0 // pred_check
    _
  $region43: #{bilstm_crf_forward.3} parent=0 // pred_check_branch
    %39 = sbr.rel (0) target = $region45
  $region44: #{bilstm_crf_forward.3} parent=0 // pred_region
    _
  $region45: #{bilstm_crf_forward.3} parent=0 // pred_fallthru
    _
  %v41 = vld [vmem:[%s0] sm:$0xf]
  %v42 = vld [vmem:[%s0 + $0x4] sm:$0xf]
  %v43 = vld [vmem:[%s0 + $0x8] sm:$0xf]
  %v44 = vld [vmem:[%s0 + $0xc] sm:$0xf]
  %v45 = vld [vmem:[%s0 + $0x10] sm:$0xf]
  %v46 = vld [vmem:[%s0 + $0x14] sm:$0xf]
  %v47 = vld [vmem:[%s0 + $0x18] sm:$0xf]
  %v48 = vld [vmem:[%s0 + $0x1c] sm:$0xf]
  %v49 = vld [vmem:[%s0 + $0x20] sm:$0xf]
  %v50 = vld [vmem:[%s0 + $0x24] sm:$0xf]
  %v51 = vld [vmem:[%s0 + $0x28] sm:$0xf]
  %v52 = vld [vmem:[%s0 + $0x2c] sm:$0xf]
  %v53 = vld [vmem:[%s0 + $0x30] sm:$0xf]
  %v54 = vld [vmem:[%s0 + $0x34] sm:$0xf]
  %v55 = vld [vmem:[%s0 + $0x38] sm:$0xf]
  %v56 = vld [vmem:[%s0 + $0x3c] sm:$0xf]
  %v57 = vld [vmem:[%s3] sm:$0xff]
  %v58 = vld [vmem:[%s3 + $0x8] sm:$0xff]
  %v59 = vld [vmem:[%s3 + $0x10] sm:$0xff]
  %v60 = vld [vmem:[%s3 + $0x18] sm:$0xff]
  %v61 = vld [vmem:[%s3 + $0x20] sm:$0xff]
  %v62 = vld [vmem:[%s3 + $0x28] sm:$0xff]
  %v63 = vld [vmem:[%s6] sm:$0x3]
  %v65 = vperm.slane %v63, 0
  %v66 = vperm.slane %v63, 1
  %v85 = vunpack.c.l.b16 %v41
  %v86 = vunpack.c.l.b16 %v42
  %v87 = vunpack.c.l.b16 %v43
  %v88 = vunpack.c.l.b16 %v44
  %v89 = vunpack.c.l.b16 %v45
  %v90 = vunpack.c.l.b16 %v46
  %v91 = vunpack.c.l.b16 %v47
  %v92 = vunpack.c.l.b16 %v48
  %v93 = vunpack.c.l.b16 %v49
  %v94 = vunpack.c.l.b16 %v50
  %v95 = vunpack.c.l.b16 %v51
  %v96 = vunpack.c.l.b16 %v52
  %v97 = vunpack.c.l.b16 %v53
  %v98 = vunpack.c.l.b16 %v54
  %v99 = vunpack.c.l.b16 %v55
  %v100 = vunpack.c.l.b16 %v56
  %v101 = vpack.c.b16 %v86, %v85
  %v102 = vpack.c.b16 %v88, %v87
  %v103 = vpack.c.b16 %v90, %v89
  %v104 = vpack.c.b16 %v92, %v91
  %v105 = vpack.c.b16 %v94, %v93
  %v106 = vpack.c.b16 %v96, %v95
  %v107 = vpack.c.b16 %v98, %v97
  %v108 = vpack.c.b16 %v100, %v99
  %v115 = vunpack.c.l.b16 %v57
  %v116 = vunpack.c.h.b16 %v57
  %v117 = vunpack.c.l.b16 %v58
  %v118 = vunpack.c.h.b16 %v58
  %v119 = vunpack.c.l.b16 %v59
  %v120 = vunpack.c.h.b16 %v59
  %v121 = vunpack.c.l.b16 %v60
  %v122 = vunpack.c.h.b16 %v60
  %v123 = vunpack.c.l.b16 %v61
  %v124 = vunpack.c.h.b16 %v61
  %v125 = vunpack.c.l.b16 %v62
  %v126 = vunpack.c.h.b16 %v62
  %v127 = vpack.c.b16 %v117, %v115
  %v128 = vpack.c.b16 %v118, %v116
  %v129 = vpack.c.b16 %v121, %v119
  %v130 = vpack.c.b16 %v122, %v120
  %v131 = vpack.c.b16 %v125, %v123
  %v132 = vpack.c.b16 %v126, %v124
  %vm139 = vcmask 392192
  %v141 = vsel %vm139, %v101, 0
  %v144 = vsel %vm139, %v102, 0
  %v147 = vsel %vm139, %v103, 0
  %v150 = vsel %vm139, %v104, 0
  %v153 = vsel %vm139, %v105, 0
  %v156 = vsel %vm139, %v106, 0
  %v159 = vsel %vm139, %v107, 0
  %v162 = vsel %vm139, %v108, 0
  %164 = vmatpush.bf16.msra.mxu0 0
  %165 = vmatpush.bf16.msra.mxu0 0
  %166 = vmatpush.bf16.msra.mxu0 0
  %167 = vmatpush.bf16.msra.mxu0 0
  %168 = vmatpush.bf16.msra.mxu0 0
  %169 = vmatpush.bf16.msra.mxu0 %v131
  %170 = vmatpush.bf16.msra.mxu0 %v129
  %171 = vmatpush.bf16.msra.mxu0 %v127
  %172 = vmatmul.bf16.gmra.mxu0 %v141
  %v173 = vpop.f32.mrf.mxu0
  %v174 = vadd.f32 %v65, %v173
  %v175 = vpop.f32.mrf.mxu0
  %v176 = vadd.f32 %v65, %v175
  %177 = vmatmul.bf16.gmra.mxu0 %v144
  %v178 = vpop.f32.mrf.mxu0
  %v179 = vadd.f32 %v65, %v178
  %v180 = vpop.f32.mrf.mxu0
  %v181 = vadd.f32 %v65, %v180
  %182 = vmatmul.bf16.gmra.mxu0 %v147
  %v183 = vpop.f32.mrf.mxu0
  %v184 = vadd.f32 %v65, %v183
  %v185 = vpop.f32.mrf.mxu0
  %v186 = vadd.f32 %v65, %v185
  %187 = vmatmul.bf16.gmra.mxu0 %v150
  %v188 = vpop.f32.mrf.mxu0
  %v189 = vadd.f32 %v65, %v188
  %v190 = vpop.f32.mrf.mxu0
  %v191 = vadd.f32 %v65, %v190
  %192 = vmatmul.bf16.gmra.mxu0 %v153
  %v193 = vpop.f32.mrf.mxu0
  %v194 = vadd.f32 %v65, %v193
  %v195 = vpop.f32.mrf.mxu0
  %v196 = vadd.f32 %v65, %v195
  %197 = vmatmul.bf16.gmra.mxu0 %v156
  %v198 = vpop.f32.mrf.mxu0
  %v199 = vadd.f32 %v65, %v198
  %v200 = vpop.f32.mrf.mxu0
  %v201 = vadd.f32 %v65, %v200
  %202 = vmatmul.bf16.gmra.mxu0 %v159
  %v203 = vpop.f32.mrf.mxu0
  %v204 = vadd.f32 %v65, %v203
  %v205 = vpop.f32.mrf.mxu0
  %v206 = vadd.f32 %v65, %v205
  %207 = vmatmul.bf16.gmra.mxu0 %v162
  %v208 = vpop.f32.mrf.mxu0
  %v209 = vadd.f32 %v65, %v208
  %v210 = vpop.f32.mrf.mxu0
  %v211 = vadd.f32 %v65, %v210
  %212 = vdwg.mxu0
  %213 = vmatpush.bf16.msra.mxu0 0
  %214 = vmatpush.bf16.msra.mxu0 0
  %215 = vmatpush.bf16.msra.mxu0 0
  %216 = vmatpush.bf16.msra.mxu0 0
  %217 = vmatpush.bf16.msra.mxu0 0
  %218 = vmatpush.bf16.msra.mxu0 %v132
  %219 = vmatpush.bf16.msra.mxu0 %v130
  %220 = vmatpush.bf16.msra.mxu0 %v128
  %221 = vmatmul.bf16.gmra.mxu0 %v141
  %v222 = vpop.f32.mrf.mxu0
  %v223 = vadd.f32 %v66, %v222
  %v224 = vpop.f32.mrf.mxu0
  %v225 = vadd.f32 %v66, %v224
  %226 = vmatmul.bf16.gmra.mxu0 %v144
  %v227 = vpop.f32.mrf.mxu0
  %v228 = vadd.f32 %v66, %v227
  %v229 = vpop.f32.mrf.mxu0
  %v230 = vadd.f32 %v66, %v229
  %231 = vmatmul.bf16.gmra.mxu0 %v147
  %v232 = vpop.f32.mrf.mxu0
  %v233 = vadd.f32 %v66, %v232
  %v234 = vpop.f32.mrf.mxu0
  %v235 = vadd.f32 %v66, %v234
  %236 = vmatmul.bf16.gmra.mxu0 %v150
  %v237 = vpop.f32.mrf.mxu0
  %v238 = vadd.f32 %v66, %v237
  %v239 = vpop.f32.mrf.mxu0
  %v240 = vadd.f32 %v66, %v239
  %241 = vmatmul.bf16.gmra.mxu0 %v153
  %v242 = vpop.f32.mrf.mxu0
  %v243 = vadd.f32 %v66, %v242
  %v244 = vpop.f32.mrf.mxu0
  %v245 = vadd.f32 %v66, %v244
  %246 = vmatmul.bf16.gmra.mxu0 %v156
  %v247 = vpop.f32.mrf.mxu0
  %v248 = vadd.f32 %v66, %v247
  %v249 = vpop.f32.mrf.mxu0
  %v250 = vadd.f32 %v66, %v249
  %251 = vmatmul.bf16.gmra.mxu0 %v159
  %v252 = vpop.f32.mrf.mxu0
  %v253 = vadd.f32 %v66, %v252
  %v254 = vpop.f32.mrf.mxu0
  %v255 = vadd.f32 %v66, %v254
  %256 = vmatmul.bf16.gmra.mxu0 %v162
  %v257 = vpop.f32.mrf.mxu0
  %v258 = vadd.f32 %v66, %v257
  %v259 = vpop.f32.mrf.mxu0
  %v260 = vadd.f32 %v66, %v259
  %261 = vdwg.mxu0
  %262 = vst [vmem:[#allocation2] sm:$0xff] %v174
  %263 = vst [vmem:[#allocation2 + $0x8] sm:$0xff] %v223
  %264 = vst [vmem:[#allocation2 + $0x10] sm:$0xff] %v176
  %265 = vst [vmem:[#allocation2 + $0x18] sm:$0xff] %v225
  %266 = vst [vmem:[#allocation2 + $0x20] sm:$0xff] %v179
  %267 = vst [vmem:[#allocation2 + $0x28] sm:$0xff] %v228
  %268 = vst [vmem:[#allocation2 + $0x30] sm:$0xff] %v181
  %269 = vst [vmem:[#allocation2 + $0x38] sm:$0xff] %v230
  %270 = vst [vmem:[#allocation2 + $0x40] sm:$0xff] %v184
  %271 = vst [vmem:[#allocation2 + $0x48] sm:$0xff] %v233
  %272 = vst [vmem:[#allocation2 + $0x50] sm:$0xff] %v186
  %273 = vst [vmem:[#allocation2 + $0x58] sm:$0xff] %v235
  %274 = vst [vmem:[#allocation2 + $0x60] sm:$0xff] %v189
  %275 = vst [vmem:[#allocation2 + $0x68] sm:$0xff] %v238
  %276 = vst [vmem:[#allocation2 + $0x70] sm:$0xff] %v191
  %277 = vst [vmem:[#allocation2 + $0x78] sm:$0xff] %v240
  %278 = vst [vmem:[#allocation2 + $0x80] sm:$0xff] %v194
  %279 = vst [vmem:[#allocation2 + $0x88] sm:$0xff] %v243
  %280 = vst [vmem:[#allocation2 + $0x90] sm:$0xff] %v196
  %281 = vst [vmem:[#allocation2 + $0x98] sm:$0xff] %v245
  %282 = vst [vmem:[#allocation2 + $0xa0] sm:$0xff] %v199
  %283 = vst [vmem:[#allocation2 + $0xa8] sm:$0xff] %v248
  %284 = vst [vmem:[#allocation2 + $0xb0] sm:$0xff] %v201
  %285 = vst [vmem:[#allocation2 + $0xb8] sm:$0xff] %v250
  %286 = vst [vmem:[#allocation2 + $0xc0] sm:$0xff] %v204
  %287 = vst [vmem:[#allocation2 + $0xc8] sm:$0xff] %v253
  %288 = vst [vmem:[#allocation2 + $0xd0] sm:$0xff] %v206
  %289 = vst [vmem:[#allocation2 + $0xd8] sm:$0xff] %v255
  %290 = vst [vmem:[#allocation2 + $0xe0] sm:$0xff] %v209
  %291 = vst [vmem:[#allocation2 + $0xe8] sm:$0xff] %v258
  %292 = vst [vmem:[#allocation2 + $0xf0] sm:$0xff] %v211
  %293 = vst [vmem:[#allocation2 + $0xf8] sm:$0xff] %v260
  loop: start=0, step=1, limit=8
  $region46: #{bilstm_crf_forward.3} parent=0 // loop_pre_header
    _
  $region47: #{bilstm_crf_forward.3} parent=0 // loop_header
    %s295 = sphi 0, %s299
    %p296 = scmp.ge.s32.totalorder %s295, 8
    %v300 = vphi 0.0, %v609
    %v301 = vphi 0.0, %v610
    %v302 = vphi 0.0, %v611
    %v303 = vphi 0.0, %v612
    %v304 = vphi 0.0, %v613
    %v305 = vphi 0.0, %v614
    %v306 = vphi 0.0, %v615
    %v307 = vphi 0.0, %v616
  $region48: #{bilstm_crf_forward.3} parent=0 // loop_header_branch
    %298 = sbr.rel (%p296) target = $region52
  $region49: #{bilstm_crf_forward.3} parent=0 // loop_body
    %s308 = ssub.s32 7, %s295
    %s309 = smul.u32 %s295, 16
    %s310 = smul.u32 %s308, 16
    %v311 = vpack.c.bf16 %v301, %v300
    %v312 = vld [vmem:[%s4] sm:$0xf]
    %v313 = vld [vmem:[%s4 + $0x4] sm:$0xf]
    %v314 = vld [vmem:[%s4 + $0x8] sm:$0xf]
    %v315 = vld [vmem:[%s4 + $0xc] sm:$0xf]
    %317 = vrot.lane.b32.xlu0 %v311, 64
    %v318 = vpop.permute.xlu0 %317
    %v323 = vunpack.c.l.b16 %v312
    %v324 = vunpack.c.l.b16 %v313
    %v325 = vunpack.c.l.b16 %v314
    %v326 = vunpack.c.l.b16 %v315
    %v327 = vpack.c.b16 %v324, %v323
    %v328 = vpack.c.b16 %v326, %v325
    %vm331 = vcmask 261120
    %v333 = vsel %vm331, %v318, 0
    %335 = vmatpush.bf16.msra.mxu0 0
    %336 = vmatpush.bf16.msra.mxu0 0
    %337 = vmatpush.bf16.msra.mxu0 0
    %338 = vmatpush.bf16.msra.mxu0 0
    %339 = vmatpush.bf16.msra.mxu0 0
    %340 = vmatpush.bf16.msra.mxu0 0
    %341 = vmatpush.bf16.msra.mxu0 %v328
    %342 = vmatpush.bf16.msra.mxu0 %v327
    %343 = vmatmul.bf16.gmra.mxu0 %v333
    %v344 = vpop.f32.mrf.mxu0
    %v345 = vadd.f32 0.0, %v344
    %v346 = vpop.f32.mrf.mxu0
    %v347 = vadd.f32 0.0, %v346
    %348 = vdwg.mxu0
    %v349 = vpack.c.bf16 %v305, %v304
    %v350 = vld [vmem:[%s5] sm:$0xf]
    %v351 = vld [vmem:[%s5 + $0x4] sm:$0xf]
    %v352 = vld [vmem:[%s5 + $0x8] sm:$0xf]
    %v353 = vld [vmem:[%s5 + $0xc] sm:$0xf]
    %355 = vrot.lane.b32.xlu0 %v349, 64
    %v356 = vpop.permute.xlu0 %355
    %v361 = vunpack.c.l.b16 %v350
    %v362 = vunpack.c.l.b16 %v351
    %v363 = vunpack.c.l.b16 %v352
    %v364 = vunpack.c.l.b16 %v353
    %v365 = vpack.c.b16 %v362, %v361
    %v366 = vpack.c.b16 %v364, %v363
    %v370 = vsel %vm331, %v356, 0
    %372 = vmatpush.bf16.msra.mxu0 0
    %373 = vmatpush.bf16.msra.mxu0 0
    %374 = vmatpush.bf16.msra.mxu0 0
    %375 = vmatpush.bf16.msra.mxu0 0
    %376 = vmatpush.bf16.msra.mxu0 0
    %377 = vmatpush.bf16.msra.mxu0 0
    %378 = vmatpush.bf16.msra.mxu0 %v366
    %379 = vmatpush.bf16.msra.mxu0 %v365
    %380 = vmatmul.bf16.gmra.mxu0 %v370
    %v381 = vpop.f32.mrf.mxu0
    %v382 = vadd.f32 0.0, %v381
    %v383 = vpop.f32.mrf.mxu0
    %v384 = vadd.f32 0.0, %v383
    %385 = vdwg.mxu0
    %s386 = sshra.s32 %s309, 3
    %s387 = sand.u32 %s309, 7
    %s388 = smul.u32 %s386, 2
    %s389 = smul.addr %s388, 8
    %s390 = scalar_lea.vmem [#allocation2], %s389
    %v391 = vld [vmem:[%s390] sm:$0xff]
    %v392 = vld [vmem:[%s390 + $0x10] sm:$0xff]
    %v393 = vadd.f32 %v391, %v345
    %v394 = vadd.f32 %v392, %v347
    %s395 = sshra.s32 %s310, 3
    %s396 = sand.u32 %s310, 7
    %s397 = smul.u32 %s395, 2
    %s398 = smul.addr %s397, 8
    %s399 = scalar_lea.vmem [#allocation2], %s398
    %v400 = vld [vmem:[%s399 + $0x8] sm:$0xff]
    %v401 = vld [vmem:[%s399 + $0x18] sm:$0xff]
    %v402 = vadd.f32 %v400, %v382
    %v403 = vadd.f32 %v401, %v384
    %v404 = vxor.u32 %v393, 2147483648
    %v405 = vxor.u32 %v394, 2147483648
    %v406 = vmul.f32 %v404, 1.442695
    %v407 = vpow.pop %v406
    %v408 = vmul.f32 %v405, 1.442695
    %v409 = vpow.pop %v408
    %v410 = vadd.f32 %v407, 1.0
    %v411 = vadd.f32 %v409, 1.0
    %v412 = vrcp.pop %v410
    %v413 = vmul.f32 %v410, %v412
    %v414 = vsub.f32 1.0, %v413
    %v415 = vmul.f32 %v412, %v414
    %v416 = vadd.f32 %v412, %v415
    %vm417 = vweird.f32 %v410
    %vm418 = vweird.f32 %v412
    %vm419 = vmor %vm417, %vm418
    %v420 = vsel %vm419, %v412, %v416
    %v421 = vand.u32 2147483647, %v410
    %vm422 = vcmp.eq.f32.partialorder %v421, 8.507059e+37
    %v423 = vand.u32 %v410, 2147483648
    %v424 = vor.u32 1.1754944e-38, %v423
    %v425 = vsel %vm422, %v424, %v420
    %v426 = vmul.f32 1.0, %v425
    %v427 = vrcp.pop %v411
    %v428 = vmul.f32 %v411, %v427
    %v429 = vsub.f32 1.0, %v428
    %v430 = vmul.f32 %v427, %v429
    %v431 = vadd.f32 %v427, %v430
    %vm432 = vweird.f32 %v411
    %vm433 = vweird.f32 %v427
    %vm434 = vmor %vm432, %vm433
    %v435 = vsel %vm434, %v427, %v431
    %v436 = vand.u32 2147483647, %v411
    %vm437 = vcmp.eq.f32.partialorder %v436, 8.507059e+37
    %v438 = vand.u32 %v411, 2147483648
    %v439 = vor.u32 1.1754944e-38, %v438
    %v440 = vsel %vm437, %v439, %v435
    %v441 = vmul.f32 1.0, %v440
    %v442 = vtanh.pop %v393
    %v443 = vtanh.pop %v394
    %v444 = vxor.u32 %v402, 2147483648
    %v445 = vxor.u32 %v403, 2147483648
    %v446 = vmul.f32 %v444, 1.442695
    %v447 = vpow.pop %v446
    %v448 = vmul.f32 %v445, 1.442695
    %v449 = vpow.pop %v448
    %v450 = vadd.f32 %v447, 1.0
    %v451 = vadd.f32 %v449, 1.0
    %v452 = vrcp.pop %v450
    %v453 = vmul.f32 %v450, %v452
    %v454 = vsub.f32 1.0, %v453
    %v455 = vmul.f32 %v452, %v454
    %v456 = vadd.f32 %v452, %v455
    %vm457 = vweird.f32 %v450
    %vm458 = vweird.f32 %v452
    %vm459 = vmor %vm457, %vm458
    %v460 = vsel %vm459, %v452, %v456
    %v461 = vand.u32 2147483647, %v450
    %vm462 = vcmp.eq.f32.partialorder %v461, 8.507059e+37
    %v463 = vand.u32 %v450, 2147483648
    %v464 = vor.u32 1.1754944e-38, %v463
    %v465 = vsel %vm462, %v464, %v460
    %v466 = vmul.f32 1.0, %v465
    %v467 = vrcp.pop %v451
    %v468 = vmul.f32 %v451, %v467
    %v469 = vsub.f32 1.0, %v468
    %v470 = vmul.f32 %v467, %v469
    %v471 = vadd.f32 %v467, %v470
    %vm472 = vweird.f32 %v451
    %vm473 = vweird.f32 %v467
    %vm474 = vmor %vm472, %vm473
    %v475 = vsel %vm474, %v467, %v471
    %v476 = vand.u32 2147483647, %v451
    %vm477 = vcmp.eq.f32.partialorder %v476, 8.507059e+37
    %v478 = vand.u32 %v451, 2147483648
    %v479 = vor.u32 1.1754944e-38, %v478
    %v480 = vsel %vm477, %v479, %v475
    %v481 = vmul.f32 1.0, %v480
    %v482 = vtanh.pop %v402
    %v483 = vtanh.pop %v403
    %v484 = vmul.f32 %v426, %v302
    %v485 = vmul.f32 %v441, %v303
    %488 = vrot.lane.b32.xlu0 %v442, 32
    %v489 = vpop.permute.xlu0 %488
    %490 = vrot.lane.b32.xlu0 %v443, 32
    %v491 = vpop.permute.xlu0 %490
    %v494 = vmul.f32 %v426, %v489
    %v495 = vmul.f32 %v441, %v491
    %498 = vrot.lane.b32.xlu0 %v494, 32
    %v499 = vpop.permute.xlu0 %498
    %500 = vrot.lane.b32.xlu0 %v495, 32
    %v501 = vpop.permute.xlu0 %500
    %v504 = vadd.f32 %v484, %v499
    %v505 = vadd.f32 %v485, %v501
    %v506 = vtanh.pop %v504
    %v507 = vtanh.pop %v505
    %510 = vrot.lane.b32.xlu0 %v506, 32
    %v511 = vpop.permute.xlu0 %510
    %512 = vrot.lane.b32.xlu0 %v507, 32
    %v513 = vpop.permute.xlu0 %512
    %v516 = vmul.f32 %v426, %v511
    %v517 = vmul.f32 %v441, %v513
    %v518 = vmul.f32 %v466, %v306
    %v519 = vmul.f32 %v481, %v307
    %522 = vrot.lane.b32.xlu0 %v482, 32
    %v523 = vpop.permute.xlu0 %522
    %524 = vrot.lane.b32.xlu0 %v483, 32
    %v525 = vpop.permute.xlu0 %524
    %v528 = vmul.f32 %v466, %v523
    %v529 = vmul.f32 %v481, %v525
    %532 = vrot.lane.b32.xlu0 %v528, 32
    %v533 = vpop.permute.xlu0 %532
    %534 = vrot.lane.b32.xlu0 %v529, 32
    %v535 = vpop.permute.xlu0 %534
    %v538 = vadd.f32 %v518, %v533
    %v539 = vadd.f32 %v519, %v535
    %v540 = vtanh.pop %v538
    %v541 = vtanh.pop %v539
    %544 = vrot.lane.b32.xlu0 %v540, 32
    %v545 = vpop.permute.xlu0 %544
    %546 = vrot.lane.b32.xlu0 %v541, 32
    %v547 = vpop.permute.xlu0 %546
    %v550 = vmul.f32 %v466, %v545
    %v551 = vmul.f32 %v481, %v547
    %s552 = scalar_lea.vmem %s1, %s309
    %v553 = vld [vmem:[%s552] sm:$0xff]
    %v554 = vld [vmem:[%s552 + $0x8] sm:$0xff]
    %vm555 = vcmp.ne.s32.totalorder %v553, 0
    %vm556 = vcmp.ne.s32.totalorder %v554, 0
    %s557 = scalar_lea.vmem %s1, %s310
    %v558 = vld [vmem:[%s557] sm:$0xff]
    %v559 = vld [vmem:[%s557 + $0x8] sm:$0xff]
    %vm560 = vcmp.ne.s32.totalorder %v558, 0
    %vm561 = vcmp.ne.s32.totalorder %v559, 0
    %v562 = vsel %vm555, 1, 0
    %v563 = vsel %vm556, 1, 0
    %564 = vset.pattern.permute.xlu0 0
    %565 = vperm.xlu0 %564, %v562
    %v566 = vpop.permute.xlu0 %565
    %567 = vset.pattern.permute.xlu0 0
    %568 = vperm.xlu0 %567, %v563
    %v569 = vpop.permute.xlu0 %568
    %vm570 = vcmp.eq.s32.totalorder %v566, 1
    %vm571 = vcmp.eq.s32.totalorder %v569, 1
    %v572 = vsel %vm570, %v516, 0.0
    %v573 = vsel %vm571, %v517, 0.0
    %576 = vrot.lane.b32.xlu0 %v572, 64
    %v577 = vpop.permute.xlu0 %576
    %578 = vrot.lane.b32.xlu0 %v573, 64
    %v579 = vpop.permute.xlu0 %578
    %s582 = scalar_lea.vmem [#allocation3], %s309
    %583 = vst.msk [vmem:[%s582] sm:$0xff] %vm331, %v577
    %584 = vst.msk [vmem:[%s582 + $0x8] sm:$0xff] %vm331, %v579
    %v585 = vsel %vm560, 1, 0
    %v586 = vsel %vm561, 1, 0
    %587 = vset.pattern.permute.xlu0 0
    %588 = vperm.xlu0 %587, %v585
    %v589 = vpop.permute.xlu0 %588
    %590 = vset.pattern.permute.xlu0 0
    %591 = vperm.xlu0 %590, %v586
    %v592 = vpop.permute.xlu0 %591
    %vm593 = vcmp.eq.s32.totalorder %v589, 1
    %vm594 = vcmp.eq.s32.totalorder %v592, 1
    %v595 = vsel %vm593, %v550, 0.0
    %v596 = vsel %vm594, %v551, 0.0
    %599 = vrot.lane.b32.xlu0 %v595, 96
    %v600 = vpop.permute.xlu0 %599
    %601 = vrot.lane.b32.xlu0 %v596, 96
    %v602 = vpop.permute.xlu0 %601
    %s605 = scalar_lea.vmem [#allocation3], %s310
    %vm606 = vcmask 523520
    %607 = vst.msk [vmem:[%s605] sm:$0xff] %vm606, %v600
    %608 = vst.msk [vmem:[%s605 + $0x8] sm:$0xff] %vm606, %v602
    %v609 = vsel %vm570, %v516, %v300
    %v610 = vsel %vm571, %v517, %v301
    %v611 = vsel %vm570, %v504, %v302
    %v612 = vsel %vm571, %v505, %v303
    %v613 = vsel %vm593, %v550, %v304
    %v614 = vsel %vm594, %v551, %v305
    %v615 = vsel %vm593, %v538, %v306
    %v616 = vsel %vm594, %v539, %v307
  $region50: #{bilstm_crf_forward.3} parent=0 // loop_footer
    %s299 = sadd.s32 1, %s295
  $region51: #{bilstm_crf_forward.3} parent=0 // loop_footer_branch
    %294 = sbr.rel target = $region47
  $region52: #{bilstm_crf_forward.3} parent=0 // loop_exit
    _
  %v617 = vld [vmem:[#allocation3] sm:$0xff]
  %v618 = vld [vmem:[#allocation3 + $0x8] sm:$0xff]
  %v619 = vld [vmem:[#allocation3 + $0x10] sm:$0xff]
  %v620 = vld [vmem:[#allocation3 + $0x18] sm:$0xff]
  %v621 = vld [vmem:[#allocation3 + $0x20] sm:$0xff]
  %v622 = vld [vmem:[#allocation3 + $0x28] sm:$0xff]
  %v623 = vld [vmem:[#allocation3 + $0x30] sm:$0xff]
  %v624 = vld [vmem:[#allocation3 + $0x38] sm:$0xff]
  %v625 = vld [vmem:[#allocation3 + $0x40] sm:$0xff]
  %v626 = vld [vmem:[#allocation3 + $0x48] sm:$0xff]
  %v627 = vld [vmem:[#allocation3 + $0x50] sm:$0xff]
  %v628 = vld [vmem:[#allocation3 + $0x58] sm:$0xff]
  %v629 = vld [vmem:[#allocation3 + $0x60] sm:$0xff]
  %v630 = vld [vmem:[#allocation3 + $0x68] sm:$0xff]
  %v631 = vld [vmem:[#allocation3 + $0x70] sm:$0xff]
  %v632 = vld [vmem:[#allocation3 + $0x78] sm:$0xff]
  %v633 = vpack.c.bf16 %v618, %v617
  %v634 = vpack.c.bf16 %v620, %v619
  %v635 = vpack.c.bf16 %v622, %v621
  %v636 = vpack.c.bf16 %v624, %v623
  %v637 = vpack.c.bf16 %v626, %v625
  %v638 = vpack.c.bf16 %v628, %v627
  %v639 = vpack.c.bf16 %v630, %v629
  %v640 = vpack.c.bf16 %v632, %v631
  %v641 = vld [vmem:[%s7] sm:$0xf]
  %v642 = vld [vmem:[%s7 + $0x4] sm:$0xf]
  %v643 = vld [vmem:[%s7 + $0x8] sm:$0xf]
  %v644 = vld [vmem:[%s7 + $0xc] sm:$0xf]
  %v645 = vld [vmem:[%s7 + $0x10] sm:$0xf]
  %v646 = vld [vmem:[%s7 + $0x14] sm:$0xf]
  %v647 = vld [vmem:[%s7 + $0x18] sm:$0xf]
  %v648 = vld [vmem:[%s7 + $0x1c] sm:$0xf]
  %v649 = vld [vmem:[%s8] sm:$0x1]
  %v651 = vperm.slane %v649, 0
  %v661 = vunpack.c.l.b16 %v641
  %v662 = vunpack.c.l.b16 %v642
  %v663 = vunpack.c.l.b16 %v643
  %v664 = vunpack.c.l.b16 %v644
  %v665 = vunpack.c.l.b16 %v645
  %v666 = vunpack.c.l.b16 %v646
  %v667 = vunpack.c.l.b16 %v647
  %v668 = vunpack.c.l.b16 %v648
  %v669 = vpack.c.b16 %v662, %v661
  %v670 = vpack.c.b16 %v664, %v663
  %v671 = vpack.c.b16 %v666, %v665
  %v672 = vpack.c.b16 %v668, %v667
  %vm677 = vcmask 523264
  %v679 = vsel %vm677, %v633, 0
  %v682 = vsel %vm677, %v634, 0
  %v685 = vsel %vm677, %v635, 0
  %v688 = vsel %vm677, %v636, 0
  %v691 = vsel %vm677, %v637, 0
  %v694 = vsel %vm677, %v638, 0
  %v697 = vsel %vm677, %v639, 0
  %v700 = vsel %vm677, %v640, 0
  %702 = vmatpush.bf16.msra.mxu0 0
  %703 = vmatpush.bf16.msra.mxu0 0
  %704 = vmatpush.bf16.msra.mxu0 0
  %705 = vmatpush.bf16.msra.mxu0 0
  %706 = vmatpush.bf16.msra.mxu0 %v672
  %707 = vmatpush.bf16.msra.mxu0 %v671
  %708 = vmatpush.bf16.msra.mxu0 %v670
  %709 = vmatpush.bf16.msra.mxu0 %v669
  %710 = vmatmul.bf16.gmra.mxu0 %v679
  %v711 = vpop.f32.mrf.mxu0
  %v712 = vadd.f32 %v651, %v711
  %v713 = vpop.f32.mrf.mxu0
  %v714 = vadd.f32 %v651, %v713
  %715 = vmatmul.bf16.gmra.mxu0 %v682
  %v716 = vpop.f32.mrf.mxu0
  %v717 = vadd.f32 %v651, %v716
  %v718 = vpop.f32.mrf.mxu0
  %v719 = vadd.f32 %v651, %v718
  %720 = vmatmul.bf16.gmra.mxu0 %v685
  %v721 = vpop.f32.mrf.mxu0
  %v722 = vadd.f32 %v651, %v721
  %v723 = vpop.f32.mrf.mxu0
  %v724 = vadd.f32 %v651, %v723
  %725 = vmatmul.bf16.gmra.mxu0 %v688
  %v726 = vpop.f32.mrf.mxu0
  %v727 = vadd.f32 %v651, %v726
  %v728 = vpop.f32.mrf.mxu0
  %v729 = vadd.f32 %v651, %v728
  %730 = vmatmul.bf16.gmra.mxu0 %v691
  %v731 = vpop.f32.mrf.mxu0
  %v732 = vadd.f32 %v651, %v731
  %v733 = vpop.f32.mrf.mxu0
  %v734 = vadd.f32 %v651, %v733
  %735 = vmatmul.bf16.gmra.mxu0 %v694
  %v736 = vpop.f32.mrf.mxu0
  %v737 = vadd.f32 %v651, %v736
  %v738 = vpop.f32.mrf.mxu0
  %v739 = vadd.f32 %v651, %v738
  %740 = vmatmul.bf16.gmra.mxu0 %v697
  %v741 = vpop.f32.mrf.mxu0
  %v742 = vadd.f32 %v651, %v741
  %v743 = vpop.f32.mrf.mxu0
  %v744 = vadd.f32 %v651, %v743
  %745 = vmatmul.bf16.gmra.mxu0 %v700
  %v746 = vpop.f32.mrf.mxu0
  %v747 = vadd.f32 %v651, %v746
  %v748 = vpop.f32.mrf.mxu0
  %v749 = vadd.f32 %v651, %v748
  %750 = vdwg.mxu0
  %751 = vst [vmem:[%s11] sm:$0xff] %v712
  %752 = vst [vmem:[%s11 + $0x8] sm:$0xff] %v714
  %753 = vst [vmem:[%s11 + $0x10] sm:$0xff] %v717
  %754 = vst [vmem:[%s11 + $0x18] sm:$0xff] %v719
  %755 = vst [vmem:[%s11 + $0x20] sm:$0xff] %v722
  %756 = vst [vmem:[%s11 + $0x28] sm:$0xff] %v724
  %757 = vst [vmem:[%s11 + $0x30] sm:$0xff] %v727
  %758 = vst [vmem:[%s11 + $0x38] sm:$0xff] %v729
  %759 = vst [vmem:[%s11 + $0x40] sm:$0xff] %v732
  %760 = vst [vmem:[%s11 + $0x48] sm:$0xff] %v734
  %761 = vst [vmem:[%s11 + $0x50] sm:$0xff] %v737
  %762 = vst [vmem:[%s11 + $0x58] sm:$0xff] %v739
  %763 = vst [vmem:[%s11 + $0x60] sm:$0xff] %v742
  %764 = vst [vmem:[%s11 + $0x68] sm:$0xff] %v744
  %765 = vst [vmem:[%s11 + $0x70] sm:$0xff] %v747
  %766 = vst [vmem:[%s11 + $0x78] sm:$0xff] %v749
  %v767 = vld [vmem:[%s9] sm:$0xff]
  %v768 = vld [vmem:[%s9 + $0x8] sm:$0xff]
  %v769 = vld [vmem:[%s9 + $0x10] sm:$0xff]
  %v770 = vld [vmem:[%s9 + $0x18] sm:$0xff]
  %v771 = vld [vmem:[%s9 + $0x20] sm:$0xff]
  %v772 = vld [vmem:[%s9 + $0x28] sm:$0xff]
  %v773 = vld [vmem:[%s9 + $0x30] sm:$0xff]
  %v774 = vld [vmem:[%s9 + $0x38] sm:$0xff]
  %v775 = vld [vmem:[%s9 + $0x40] sm:$0xff]
  %v776 = vld [vmem:[%s9 + $0x48] sm:$0xff]
  %v777 = vld [vmem:[%s9 + $0x50] sm:$0xff]
  %v778 = vld [vmem:[%s9 + $0x58] sm:$0xff]
  %v779 = vld [vmem:[%s9 + $0x60] sm:$0xff]
  %v780 = vld [vmem:[%s9 + $0x68] sm:$0xff]
  %v781 = vld [vmem:[%s9 + $0x70] sm:$0xff]
  %v782 = vld [vmem:[%s9 + $0x78] sm:$0xff]
  %v783 = vlaneseq
  %v784 = vand.u32 %v783, 127
  %vm785 = vcmp.eq.s32.totalorder %v784, 5
  %v786 = vsel %vm785, 0.0, -10000.0
  loop: start=0, step=1, limit=8
  $region53: #{bilstm_crf_forward.3} parent=0 // loop_pre_header
    _
  $region54: #{bilstm_crf_forward.3} parent=0 // loop_header
    %s788 = sphi 0, %s792
    %p789 = scmp.ge.s32.totalorder %s788, 8
    %v793 = vphi %v786, %v845
    %v794 = vphi %v786, %v846
    %v795 = vphi 0.0, %v857
    %v796 = vphi 0.0, %v858
  $region55: #{bilstm_crf_forward.3} parent=0 // loop_header_branch
    %791 = sbr.rel (%p789) target = $region59
  $region56: #{bilstm_crf_forward.3} parent=0 // loop_body
    %s797 = smul.u32 %s788, 16
    %s798 = scalar_lea.vmem %s11, %s797
    %v799 = vld [vmem:[%s798] sm:$0xff]
    %v800 = vld [vmem:[%s798 + $0x8] sm:$0xff]
    %s801 = scalar_lea.vmem %s2, %s797
    %v802 = vld [vmem:[%s801] sm:$0xff]
    %v803 = vld [vmem:[%s801 + $0x8] sm:$0xff]
    %vm804 = vcmp.ne.s32.totalorder %v802, 0
    %vm805 = vcmp.ne.s32.totalorder %v803, 0
    %806 = vmax.xlane.f32.xlu0 %v793
    %v807 = vpop.xlane.xlu0 %806
    %808 = vmax.xlane.f32.xlu0 %v794
    %v809 = vpop.xlane.xlu0 %808
    %v810 = vsub.f32 %v793, %v807
    %v811 = vsub.f32 %v794, %v809
    %v812 = vmul.f32 %v810, 1.442695
    %v813 = vpow.pop %v812
    %v814 = vmul.f32 %v811, 1.442695
    %v815 = vpow.pop %v814
    %816 = vmatpush.msra.mxu0 %v782
    %817 = vmatpush.msra.mxu0 %v781
    %818 = vmatpush.msra.mxu0 %v780
    %819 = vmatpush.msra.mxu0 %v779
    %820 = vmatpush.msra.mxu0 %v778
    %821 = vmatpush.msra.mxu0 %v777
    %822 = vmatpush.msra.mxu0 %v776
    %823 = vmatpush.msra.mxu0 %v775
    %824 = vmatpush.msra.mxu0 %v774
    %825 = vmatpush.msra.mxu0 %v773
    %826 = vmatpush.msra.mxu0 %v772
    %827 = vmatpush.msra.mxu0 %v771
    %828 = vmatpush.msra.mxu0 %v770
    %829 = vmatpush.msra.mxu0 %v769
    %830 = vmatpush.msra.mxu0 %v768
    %831 = vmatpush.msra.mxu0 %v767
    %832 = vmatmul.f32.gmra.mxu0 %v813
    %v833 = vpop.f32.mrf.mxu0
    %v834 = vadd.f32 0.0, %v833
    %835 = vmatmul.f32.gmra.mxu0 %v815
    %v836 = vpop.f32.mrf.mxu0
    %v837 = vadd.f32 0.0, %v836
    %838 = vdwg.mxu0
    %v839 = vlog2.pop %v834
    %v840 = vmul.f32 %v839, 0.6931472
    %v841 = vlog2.pop %v837
    %v842 = vmul.f32 %v841, 0.6931472
    %v843 = vadd.f32 %v807, %v840
    %v844 = vadd.f32 %v809, %v842
    %v845 = vadd.f32 %v843, %v799
    %v846 = vadd.f32 %v844, %v800
    %v847 = vsel %vm804, 1, 0
    %v848 = vsel %vm805, 1, 0
    %849 = vset.pattern.permute.xlu0 0
    %850 = vperm.xlu0 %849, %v847
    %v851 = vpop.permute.xlu0 %850
    %852 = vset.pattern.permute.xlu0 0
    %853 = vperm.xlu0 %852, %v848
    %v854 = vpop.permute.xlu0 %853
    %vm855 = vcmp.eq.s32.totalorder %v851, 1
    %vm856 = vcmp.eq.s32.totalorder %v854, 1
    %v857 = vsel %vm855, %v845, %v795
    %v858 = vsel %vm856, %v846, %v796
  $region57: #{bilstm_crf_forward.3} parent=0 // loop_footer
    %s792 = sadd.s32 1, %s788
  $region58: #{bilstm_crf_forward.3} parent=0 // loop_footer_branch
    %787 = sbr.rel target = $region54
  $region59: #{bilstm_crf_forward.3} parent=0 // loop_exit
    _
  %v859 = vld [vmem:[%s10] sm:$0x1]
  %v861 = vperm.slane %v859, 0
  %v863 = vadd.f32 %v795, %v861
  %v864 = vadd.f32 %v796, %v861
  %865 = vmax.xlane.f32.xlu0 %v863
  %v866 = vpop.xlane.xlu0 %865
  %867 = vmax.xlane.f32.xlu0 %v864
  %v868 = vpop.xlane.xlu0 %867
  %v869 = vsub.f32 %v863, %v866
  %v870 = vsub.f32 %v864, %v868
  %v871 = vmul.f32 %v869, 1.442695
  %v872 = vpow.pop %v871
  %v873 = vmul.f32 %v870, 1.442695
  %v874 = vpow.pop %v873
  %875 = vadd.xlane.f32.xlu0 %v872
  %v876 = vpop.xlane.xlu0 %875
  %877 = vadd.xlane.f32.xlu0 %v874
  %v878 = vpop.xlane.xlu0 %877
  %v879 = vlog2.pop %v876
  %v880 = vmul.f32 %v879, 0.6931472
  %v881 = vlog2.pop %v878
  %v882 = vmul.f32 %v881, 0.6931472
  %v883 = vadd.f32 %v866, %v880
  %v884 = vadd.f32 %v868, %v882
  %vm885 = vcmask 7168
  %886 = vst.msk [vmem:[%s12] sm:$0xff] %vm885, %v883
  %887 = vst.msk [vmem:[%s12 + $0x8] sm:$0xff] %vm885, %v884
  // Predicated region
  $region60: #{bilstm_crf_forward.3} parent=0 // pred_check
    _
  $region61: #{bilstm_crf_forward.3} parent=0 // pred_check_branch
    %889 = sbr.rel (0) target = $region63
  $region62: #{bilstm_crf_forward.3} parent=0 // pred_region
    _
  $region63: #{bilstm_crf_forward.3} parent=0 // pred_fallthru
    _
  // Predicated region
  $region64: #{bilstm_crf_forward.3} parent=0 // pred_check
    _
  $region65: #{bilstm_crf_forward.3} parent=0 // pred_check_branch
    %891 = sbr.rel (0) target = $region67
  $region66: #{bilstm_crf_forward.3} parent=0 // pred_region
    _
  $region67: #{bilstm_crf_forward.3} parent=0 // pred_fallthru
    _
  // Predicated region
  $region68: #{bilstm_crf_forward.3} parent=0 // pred_check
    _
  $region69: #{bilstm_crf_forward.3} parent=0 // pred_check_branch
    %893 = sbr.rel (0) target = $region71
  $region70: #{bilstm_crf_forward.3} parent=0 // pred_region
    _
  $region71: #{bilstm_crf_forward.3} parent=0 // pred_fallthru
    _
  // Predicated region
  $region72: #{bilstm_crf_forward.3} parent=0 // pred_check
    _
  $region73: #{bilstm_crf_forward.3} parent=0 // pred_check_branch
    %895 = sbr.rel (0) target = $region75
  $region74: #{bilstm_crf_forward.3} parent=0 // pred_region
    _
  $region75: #{bilstm_crf_forward.3} parent=0 // pred_fallthru
    _

</llo_original>
